<compile_context>
chip_gen: v5e
topology: v5e:2x2
jax: 0.10.0
libtpu: 0.0.40
codegen_flags: <defaults>
</compile_context>

<pallas_src>
import numpy as np
import jax
import jax.numpy as jnp
from jax.experimental import pallas as pl
from jax.experimental.pallas import tpu as pltpu

EPS = 1e-6        # BatchNorm eps from the module
OUT_PAD = 128     # lane-dense padded fc2 output width
N_PHASES = 5


def _bn(x):
    # torch BatchNorm1d, training mode, affine at init (gamma=1, beta=0), biased var.
    mu = jnp.mean(x, axis=0, keepdims=True)
    var = jnp.mean((x - mu) ** 2, axis=0, keepdims=True)
    return (x - mu) * jax.lax.rsqrt(var + EPS)


def gcn_norm_adjacency(edge_index, n):
    """Dense D^{-1/2}(A+I)D^{-1/2} with A[target, source] = 1 per edge (PyG GCNConv)."""
    loops = jnp.stack([jnp.arange(n, dtype=jnp.int32)] * 2)
    ei = jnp.concatenate([edge_index, loops], axis=1)
    src, dst = ei[0], ei[1]
    deg = jnp.zeros((n,), jnp.float32).at[dst].add(1.0)
    dinv = jnp.where(deg > 0, jax.lax.rsqrt(deg), 0.0)
    norm = dinv[src] * dinv[dst]
    return jnp.zeros((n, n), jnp.float32).at[dst, src].add(norm)


def _make_kernel(n_rows, tile_e, cache_a):
    inv_n = 1.0 / float(n_rows)
    f32, bf16 = jnp.float32, jnp.bfloat16

    def kernel(feat_ref, a_ref, w1_ref, b1_ref, w2_ref, b2_ref,
               wfc2_ref, bfc2_ref, out_ref,
               x1_scr, h1_scr, x2_scr, h2_scr, st1_scr, st2_scr, *maybe_a_scr):
        a_scr = maybe_a_scr[0] if cache_a else None
        p = pl.program_id(0)                       # phase
        i = pl.program_id(1)                       # E tile
        r0 = pl.multiple_of(i * tile_e, tile_e)
        rows = pl.ds(r0, tile_e)

        @pl.when(jnp.logical_and(p == 0, i == 0))
        def _init():
            st1_scr[...] = jnp.zeros_like(st1_scr)
            st2_scr[...] = jnp.zeros_like(st2_scr)

        # phase 0: conv1 feature transform, single K=3F contraction, stored bf16.
        @pl.when(p == 0)
        def _phase0():
            x1_scr[rows, :] = jnp.dot(
                feat_ref[...], w1_ref[...],
                preferred_element_type=f32).astype(bf16)

        # phase 1: conv1 aggregation relu(A_hat @ X1 + b1) + bn1 stats.
        @pl.when(p == 1)
        def _phase1():
            if cache_a:
                a_scr[rows, :] = a_ref[...]        # stage tile for reuse in phase 3
            h = jnp.dot(a_ref[...], x1_scr[...],
                        preferred_element_type=f32) + b1_ref[...]
            h = jnp.maximum(h, 0.0)
            h1_scr[rows, :] = h
            st1_scr[0:1, :] = st1_scr[0:1, :] + jnp.sum(h, axis=0, keepdims=True)
            st1_scr[1:2, :] = st1_scr[1:2, :] + jnp.sum(h * h, axis=0, keepdims=True)

        # phase 2: apply bn1, X2 = bn1(h1) @ W2, stored bf16.
        @pl.when(p == 2)
        def _phase2():
            mu = st1_scr[0:1, :] * inv_n
            var = jnp.maximum(st1_scr[1:2, :] * inv_n - mu * mu, 0.0)
            h1n = (h1_scr[rows, :] - mu) * jax.lax.rsqrt(var + EPS)
            x2_scr[rows, :] = jnp.dot(h1n.astype(bf16), w2_ref[...],
                                      preferred_element_type=f32).astype(bf16)

        # phase 3: conv2 aggregation relu(A_hat @ X2 + b2) + bn2 stats.
        @pl.when(p == 3)
        def _phase3():
            a_tile = a_scr[rows, :] if cache_a else a_ref[...]
            h = jnp.dot(a_tile, x2_scr[...],
                        preferred_element_type=f32) + b2_ref[...]
            h = jnp.maximum(h, 0.0)
            h2_scr[rows, :] = h
            st2_scr[0:1, :] = st2_scr[0:1, :] + jnp.sum(h, axis=0, keepdims=True)
            st2_scr[1:2, :] = st2_scr[1:2, :] + jnp.sum(h * h, axis=0, keepdims=True)

        # phase 4: apply bn2, fc2 into the lane-dense 128-wide padded output slab.
        @pl.when(p == N_PHASES - 1)
        def _phase4():
            mu = st2_scr[0:1, :] * inv_n
            var = jnp.maximum(st2_scr[1:2, :] * inv_n - mu * mu, 0.0)
            h2n = (h2_scr[rows, :] - mu) * jax.lax.rsqrt(var + EPS)
            out_ref[...] = jnp.dot(h2n.astype(bf16), wfc2_ref[...],
                                   preferred_element_type=f32) + bfc2_ref[...]

    return kernel


def edge_predictor_forward(params, x_idx, edge_index, pos):
    f32, bf16 = jnp.float32, jnp.bfloat16
    ei = edge_index.astype(jnp.int32) - 1          # 1-indexed -> 0-indexed
    row, col = ei[0], ei[1]

    # Glue (pure indexing / tiny node-level math): embedding gather, batchnorm4
    # over nodes, per-edge gathers and the 3-wide geometric distance.
    emb = jnp.take(params["embedding"], x_idx, axis=0)            # [N, F]
    xb = _bn(emb)
    xr = jnp.take(xb, row, axis=0)                                # [E, F]
    xc = jnp.take(xb, col, axis=0)                                # [E, F]
    diff = (jnp.take(pos, col, axis=0) - jnp.take(pos, row, axis=0)).astype(f32)
    dist = jnp.sqrt(jnp.sum(diff * diff, axis=1, keepdims=True))  # [E, 1]

    # bn3 folded exactly: ef = dist*w + b is affine in the scalar dist, so
    # bn3(ef)[:, j] = (dist - mean(dist)) * w_j * rsqrt(var(dist) * w_j^2 + eps).
    w_fc1 = params["fc1_w"]                                       # [1, F]
    mu_d = jnp.mean(dist, axis=0, keepdims=True)
    var_d = jnp.mean((dist - mu_d) ** 2, axis=0, keepdims=True)
    ef_n = (dist - mu_d) * (w_fc1 * jax.lax.rsqrt(var_d * (w_fc1 * w_fc1) + EPS))

    # Single lane-packed conv1 input: [xb[row] | xb[col] | bn3(ef)]  ->  [E, 3F].
    feat = jnp.concatenate([xr, xc, ef_n], axis=1).astype(bf16)

    E = int(row.shape[0])
    F = int(xb.shape[1])
    nef = int(params["fc2_w"].shape[1])

    # Dense GCN-normalized adjacency over the E feature rows (module semantics),
    # streamed as bf16 tiles; accumulation in-kernel stays f32.
    a_hat = gcn_norm_adjacency(ei, E).astype(bf16)

    w1 = params["conv1_w"].astype(bf16)            # [3F, 128]
    w2 = params["conv2_w"].astype(bf16)            # [128, 64]
    # fc2 padded to a lane-dense 128-wide output slab (sliced after the call).
    wfc2_p = jnp.zeros((64, OUT_PAD), f32).at[:, :nef].set(params["fc2_w"]).astype(bf16)
    bfc2_p = jnp.zeros((1, OUT_PAD), f32).at[:, :nef].set(params["fc2_b"])

    TE = 128 if (E % 128 == 0 and E >= 256) else E   # E tile (full E for tiny graphs)
    n_tiles = E // TE
    last = n_tiles - 1
    # TODO(synk): E not a multiple of the tile would need masked BN statistics and
    # a padded A_hat; large irregular E currently falls back to a single huge tile.

    # ---- VMEM budget: decide A_hat caching and derive vmem_limit_bytes. ----------
    def _b(shape, itemsize):
        return int(np.prod(shape)) * itemsize

    blocks = 2 * (_b((TE, 3 * F), 2) + _b((TE, E), 2) + _b((3 * F, 128), 2)
                  + _b((1, 128), 4) + _b((128, 64), 2) + _b((1, 64), 4)
                  + _b((64, OUT_PAD), 2) + _b((1, OUT_PAD), 4)
                  + _b((TE, OUT_PAD), 4))                    # double-buffered blocks
    scratch_base = (_b((E, 128), 2) + _b((E, 128), 4) + _b((E, 64), 2)
                    + _b((E, 64), 4) + _b((2, 128), 4) + _b((2, 64), 4))
    a_cache_bytes = _b((E, E), 2)
    cache_a = (blocks + scratch_base + a_cache_bytes) <= 40 * 1024 * 1024
    vmem_need = blocks + scratch_base + (a_cache_bytes if cache_a else 0)
    vmem_limit = int(min(64 * 1024 * 1024,
                         max(16 * 1024 * 1024, vmem_need + 8 * 1024 * 1024)))

    # ---- phase-gated index maps ---------------------------------------------------
    const_map = lambda p, i: (0, 0)
    # feat is only consumed in phase 0; hold the last-resident block afterwards.
    feat_map = lambda p, i: (jnp.where(p == 0, i, last), 0)
    # output block index only advances in the final phase (no stale writebacks).
    out_map = lambda p, i: (jnp.where(p == N_PHASES - 1, i, 0), 0)

    if cache_a:
        # A_hat only streamed during phase 1; phase 0 acts as a prefetch of tile 0.
        def a_map(p, i):
            return (jnp.where(p == 0, 0, jnp.where(p == 1, i, last)), 0)
    else:
        # A_hat streamed in both aggregation phases; held resident in between
        # (no snap-back refetches at phase boundaries).
        def a_map(p, i):
            idx = jnp.where(jnp.logical_or(p == 1, p == 3), i,
                            jnp.where(p == 0, 0, last))
            return (idx, 0)

    in_specs = [
        pl.BlockSpec((TE, 3 * F), feat_map),       # feat = [xr | xc | ef_n] (bf16)
        pl.BlockSpec((TE, E), a_map),              # A_hat tile (bf16)
        pl.BlockSpec((3 * F, 128), const_map),     # W1
        pl.BlockSpec((1, 128), const_map),         # b1
        pl.BlockSpec((128, 64), const_map),        # W2
        pl.BlockSpec((1, 64), const_map),          # b2
        pl.BlockSpec((64, OUT_PAD), const_map),    # fc2 w (padded)
        pl.BlockSpec((1, OUT_PAD), const_map),     # fc2 b (padded)
    ]
    out_spec = pl.BlockSpec((TE, OUT_PAD), out_map)

    scratch = [
        pltpu.VMEM((E, 128), bf16),    # X1 = feat @ W1 (bf16, cast once)
        pltpu.VMEM((E, 128), f32),     # relu(A@X1 + b1), pre-bn1
        pltpu.VMEM((E, 64), bf16),     # X2 = h1n @ W2 (bf16, cast once)
        pltpu.VMEM((E, 64), f32),      # relu(A@X2 + b2), pre-bn2
        pltpu.VMEM((2, 128), f32),     # bn1 sum / sumsq
        pltpu.VMEM((2, 64), f32),      # bn2 sum / sumsq
    ]
    if cache_a:
        scratch.append(pltpu.VMEM((E, E), bf16))   # cached A_hat for phase 3

    a_hbm_reads = 1 if cache_a else 2
    flops = 2 * E * (3 * F * 128 + E * 128 + 128 * 64 + E * 64 + 64 * nef)
    bytes_accessed = (a_hbm_reads * E * E * 2 + E * 3 * F * 2 + E * OUT_PAD * 4
                      + (3 * F * 128 + 128 * 64 + 64 * OUT_PAD) * 2
                      + (128 + 64 + OUT_PAD) * 4)
    cost = pl.CostEstimate(flops=int(flops), transcendentals=int(2 * E),
                           bytes_accessed=int(bytes_accessed))

    out_padded = pl.pallas_call(
        _make_kernel(E, TE, cache_a),
        out_shape=jax.ShapeDtypeStruct((E, OUT_PAD), f32),
        grid_spec=pltpu.PrefetchScalarGridSpec(
            num_scalar_prefetch=0,
            grid=(N_PHASES, n_tiles),
            in_specs=in_specs,
            out_specs=out_spec,
            scratch_shapes=scratch),
        compiler_params=pltpu.CompilerParams(
            # Phases are sequential and E tiles accumulate shared BN statistics,
            # so both grid axes must stay "arbitrary" (serial on one TensorCore).
            # TODO(synk): per-core BN partial sums would unlock v7x's second TC.
            dimension_semantics=("arbitrary", "arbitrary"),
            vmem_limit_bytes=vmem_limit),
        cost_estimate=cost,
    )(feat, a_hat, w1, params["conv1_b"], w2, params["conv2_b"], wfc2_p, bfc2_p)

    return out_padded[:, :nef]


def reference_forward(params, x_idx, edge_index, pos):
    """Pure-JAX f32 reference mirroring the PyTorch forward semantics."""
    ei = edge_index.astype(jnp.int32) - 1
    row, col = ei[0], ei[1]
    emb = jnp.take(params["embedding"], x_idx, axis=0)
    xb = _bn(emb)
    dist = jnp.linalg.norm(pos[col] - pos[row], axis=1, keepdims=True)
    ef = _bn(dist * params["fc1_w"] + params["fc1_b"])
    feat = jnp.concatenate([xb[row], xb[col], ef], axis=1)
    A = gcn_norm_adjacency(ei, feat.shape[0])
    h1 = _bn(jax.nn.relu(A @ (feat @ params["conv1_w"]) + params["conv1_b"]))
    h2 = _bn(jax.nn.relu(A @ (h1 @ params["conv2_w"]) + params["conv2_b"]))
    return h2 @ params["fc2_w"] + params["fc2_b"]


if __name__ == "__main__":
    # Small synthetic sizes consistent with the module: conv1 expects 3*F and the
    # forward concatenates [emb[row], emb[col], edge_feat] => embedding_dim == F.
    NUM_NODE_FEATURES = 32
    EMBEDDING_DIM = NUM_NODE_FEATURES
    NUM_EDGE_FEATURES = 8
    VOCAB = 8
    N = 256            # atoms
    E = 256            # bonds (ring graph) -> two 128-row E tiles in the kernel

    key = jax.random.PRNGKey(0)
    k = jax.random.split(key, 8)

    params = {
        "embedding": jax.random.normal(k[0], (VOCAB, EMBEDDING_DIM), jnp.float32),
        "fc1_w": jax.random.normal(k[1], (1, NUM_NODE_FEATURES), jnp.float32) * np.sqrt(2.0),
        "fc1_b": jnp.zeros((1, NUM_NODE_FEATURES), jnp.float32),
        "conv1_w": jax.random.normal(k[2], (3 * NUM_NODE_FEATURES, 128), jnp.float32)
                   * np.sqrt(2.0 / (3 * NUM_NODE_FEATURES)),
        "conv1_b": jnp.zeros((1, 128), jnp.float32),
        "conv2_w": jax.random.normal(k[3], (128, 64), jnp.float32) * np.sqrt(2.0 / 128.0),
        "conv2_b": jnp.zeros((1, 64), jnp.float32),
        "fc2_w": jax.random.normal(k[4], (64, NUM_EDGE_FEATURES), jnp.float32) * np.sqrt(2.0 / 64.0),
        "fc2_b": jnp.zeros((1, NUM_EDGE_FEATURES), jnp.float32),
    }

    # TODO(synk): the original forward maps atom symbols -> indices via a Python
    # dict; here atom indices are supplied directly as integers.
    x_idx = jax.random.randint(k[5], (N,), 0, VOCAB, dtype=jnp.int32)
    pos = jax.random.normal(k[6], (N, 3), jnp.float32)
    src = jnp.arange(N, dtype=jnp.int32)
    dst = (src + 1) % N
    edge_index = jnp.stack([src, dst]) + 1          # 1-indexed, forward subtracts 1

    out = jax.block_until_ready(edge_predictor_forward(params, x_idx, edge_index, pos))
    ref = jax.block_until_ready(reference_forward(params, x_idx, edge_index, pos))

    assert out.shape == (E, NUM_EDGE_FEATURES) and out.dtype == jnp.float32
    assert bool(jnp.all(jnp.isfinite(out)))

    out_np, ref_np = np.asarray(out), np.asarray(ref)
    # Kernel feeds the MXU bf16 operands (f32 accumulation) per the perf guidance,
    # so the element-wise tolerance vs. the f32 reference is correspondingly looser;
    # the aggregate relative error check is the tight one.
    rel_l2 = np.linalg.norm(out_np - ref_np) / np.linalg.norm(ref_np)
    assert rel_l2 < 3e-2, f"relative L2 error too large: {rel_l2}"
    np.testing.assert_allclose(out_np, ref_np, rtol=1e-1, atol=1e-1)
    print("KERNEL_OK")
</pallas_src>

<mosaic_0001>
module attributes {stable_mosaic.version = 11 : i64} {
  func.func @kernel(%arg0: i32, %arg1: i32, %arg2: memref<128x96xbf16, #tpu.memory_space<vmem>>, %arg3: memref<128x256xbf16, #tpu.memory_space<vmem>>, %arg4: memref<96x128xbf16, #tpu.memory_space<vmem>>, %arg5: memref<1x128xf32, #tpu.memory_space<vmem>>, %arg6: memref<128x64xbf16, #tpu.memory_space<vmem>>, %arg7: memref<1x64xf32, #tpu.memory_space<vmem>>, %arg8: memref<64x128xbf16, #tpu.memory_space<vmem>>, %arg9: memref<1x128xf32, #tpu.memory_space<vmem>>, %arg10: memref<128x128xf32, #tpu.memory_space<vmem>>, %arg11: memref<256x128xbf16, #tpu.memory_space<vmem>>, %arg12: memref<256x128xf32, #tpu.memory_space<vmem>>, %arg13: memref<256x64xbf16, #tpu.memory_space<vmem>>, %arg14: memref<256x64xf32, #tpu.memory_space<vmem>>, %arg15: memref<2x128xf32, #tpu.memory_space<vmem>>, %arg16: memref<2x64xf32, #tpu.memory_space<vmem>>, %arg17: memref<256x256xbf16, #tpu.memory_space<vmem>>) attributes {dimension_semantics = [#tpu.dimension_semantics<arbitrary>, #tpu.dimension_semantics<arbitrary>], iteration_bounds = array<i64: 5, 2>, scalar_prefetch = 0 : i64, scratch_operands = 7 : i64, tpu.core_type = #tpu.core_type<tc>, window_params = [{transform_indices = @transform_0, window_bounds = array<i64: 128, 96>}, {transform_indices = @transform_1, window_bounds = array<i64: 128, 256>}, {pipeline_mode = #tpu.pipeline_mode<synchronous>, transform_indices = @transform_2, window_bounds = array<i64: 96, 128>}, {pipeline_mode = #tpu.pipeline_mode<synchronous>, transform_indices = @transform_3, window_bounds = array<i64: 1, 128>}, {pipeline_mode = #tpu.pipeline_mode<synchronous>, transform_indices = @transform_4, window_bounds = array<i64: 128, 64>}, {pipeline_mode = #tpu.pipeline_mode<synchronous>, transform_indices = @transform_5, window_bounds = array<i64: 1, 64>}, {pipeline_mode = #tpu.pipeline_mode<synchronous>, transform_indices = @transform_6, window_bounds = array<i64: 64, 128>}, {pipeline_mode = #tpu.pipeline_mode<synchronous>, transform_indices = @transform_7, window_bounds = array<i64: 1, 128>}, {transform_indices = @transform_8, window_bounds = array<i64: 128, 128>}]} {
    %c128_i32 = arith.constant 128 : i32
    %0 = arith.muli %arg1, %c128_i32 : i32
    %1 = tpu.assume_multiple %0, 128 : i32
    %c0_i32 = arith.constant 0 : i32
    %2 = arith.cmpi eq, %arg0, %c0_i32 : i32
    %c0_i32_0 = arith.constant 0 : i32
    %3 = arith.cmpi eq, %arg1, %c0_i32_0 : i32
    %4 = arith.andi %2, %3 : i1
    %5 = arith.extui %4 : i1 to i32
    %c0_i32_1 = arith.constant 0 : i32
    %6 = arith.cmpi ne, %5, %c0_i32_1 : i32
    scf.if %6 {
      %cst = arith.constant 0.000000e+00 : f32
      %22 = vector.broadcast %cst : f32 to vector<2x128xf32>
      %c0 = arith.constant 0 : index
      %c0_8 = arith.constant 0 : index
      %23 = vector.load %arg15[%c0, %c0_8] : memref<2x128xf32, #tpu.memory_space<vmem>>, vector<2x128xf32>
      tpu.vector_store %arg15[%c0, %c0_8], %22 {strides = array<i32>} : memref<2x128xf32, #tpu.memory_space<vmem>>, vector<2x128xf32>,
      %cst_9 = arith.constant 0.000000e+00 : f32
      %24 = vector.broadcast %cst_9 : f32 to vector<2x64xf32>
      %c0_10 = arith.constant 0 : index
      %c0_11 = arith.constant 0 : index
      %25 = vector.load %arg16[%c0_10, %c0_11] : memref<2x64xf32, #tpu.memory_space<vmem>>, vector<2x64xf32>
      tpu.vector_store %arg16[%c0_10, %c0_11], %24 {strides = array<i32>} : memref<2x64xf32, #tpu.memory_space<vmem>>, vector<2x64xf32>,
    } else {
    }
    %c0_i32_2 = arith.constant 0 : i32
    %7 = arith.cmpi eq, %arg0, %c0_i32_2 : i32
    %8 = arith.extui %7 : i1 to i32
    %c0_i32_3 = arith.constant 0 : i32
    %9 = arith.cmpi ne, %8, %c0_i32_3 : i32
    scf.if %9 {
      %c0 = arith.constant 0 : index
      %c0_8 = arith.constant 0 : index
      %22 = vector.load %arg2[%c0, %c0_8] : memref<128x96xbf16, #tpu.memory_space<vmem>>, vector<128x96xbf16>
      %c0_9 = arith.constant 0 : index
      %c0_10 = arith.constant 0 : index
      %23 = vector.load %arg4[%c0_9, %c0_10] : memref<96x128xbf16, #tpu.memory_space<vmem>>, vector<96x128xbf16>
      %cst = arith.constant dense<0.000000e+00> : vector<128x128xf32>
      %24 = tpu.matmul %22, %23, %cst {dimension_numbers = #tpu.dot_dimension_numbers<[1], [0], [0], [1], [0, 0, 1, 1], [], []>} : vector<128x96xbf16>, vector<96x128xbf16>, vector<128x128xf32> -> vector<128x128xf32>
      %25 = arith.truncf %24 : vector<128x128xf32> to vector<128x128xbf16>
      %26 = arith.index_cast %1 : i32 to index
      %c0_11 = arith.constant 0 : index
      %27 = vector.load %arg11[%26, %c0_11] : memref<256x128xbf16, #tpu.memory_space<vmem>>, vector<128x128xbf16>
      tpu.vector_store %arg11[%26, %c0_11], %25 {strides = array<i32>} : memref<256x128xbf16, #tpu.memory_space<vmem>>, vector<128x128xbf16>,
    } else {
    }
    %c1_i32 = arith.constant 1 : i32
    %10 = arith.cmpi eq, %arg0, %c1_i32 : i32
    %11 = arith.extui %10 : i1 to i32
    %c0_i32_4 = arith.constant 0 : i32
    %12 = arith.cmpi ne, %11, %c0_i32_4 : i32
    scf.if %12 {
      %c0 = arith.constant 0 : index
      %c0_8 = arith.constant 0 : index
      %22 = vector.load %arg3[%c0, %c0_8] : memref<128x256xbf16, #tpu.memory_space<vmem>>, vector<128x256xbf16>
      %23 = arith.index_cast %1 : i32 to index
      %c0_9 = arith.constant 0 : index
      %24 = vector.load %arg17[%23, %c0_9] : memref<256x256xbf16, #tpu.memory_space<vmem>>, vector<128x256xbf16>
      tpu.vector_store %arg17[%23, %c0_9], %22 {strides = array<i32>} : memref<256x256xbf16, #tpu.memory_space<vmem>>, vector<128x256xbf16>,
      %c0_10 = arith.constant 0 : index
      %c0_11 = arith.constant 0 : index
      %25 = vector.load %arg3[%c0_10, %c0_11] : memref<128x256xbf16, #tpu.memory_space<vmem>>, vector<128x256xbf16>
      %c0_12 = arith.constant 0 : index
      %c0_13 = arith.constant 0 : index
      %26 = vector.load %arg11[%c0_12, %c0_13] : memref<256x128xbf16, #tpu.memory_space<vmem>>, vector<256x128xbf16>
      %cst = arith.constant dense<0.000000e+00> : vector<128x128xf32>
      %27 = tpu.matmul %25, %26, %cst {dimension_numbers = #tpu.dot_dimension_numbers<[1], [0], [0], [1], [0, 0, 1, 1], [], []>} : vector<128x256xbf16>, vector<256x128xbf16>, vector<128x128xf32> -> vector<128x128xf32>
      %c0_14 = arith.constant 0 : index
      %c0_15 = arith.constant 0 : index
      %28 = vector.load %arg5[%c0_14, %c0_15] : memref<1x128xf32, #tpu.memory_space<vmem>>, vector<1x128xf32>
      %29 = vector.broadcast %28 : vector<1x128xf32> to vector<128x128xf32>
      %30 = arith.addf %27, %29 : vector<128x128xf32>
      %cst_16 = arith.constant 0.000000e+00 : f32
      %31 = vector.broadcast %cst_16 : f32 to vector<128x128xf32>
      %32 = arith.maximumf %30, %31 : vector<128x128xf32>
      %33 = arith.index_cast %1 : i32 to index
      %c0_17 = arith.constant 0 : index
      %34 = vector.load %arg12[%33, %c0_17] : memref<256x128xf32, #tpu.memory_space<vmem>>, vector<128x128xf32>
      tpu.vector_store %arg12[%33, %c0_17], %32 {strides = array<i32>} : memref<256x128xf32, #tpu.memory_space<vmem>>, vector<128x128xf32>,
      %c0_18 = arith.constant 0 : index
      %c0_19 = arith.constant 0 : index
      %35 = vector.load %arg15[%c0_18, %c0_19] : memref<2x128xf32, #tpu.memory_space<vmem>>, vector<1x128xf32>
      %cst_20 = arith.constant dense<0.000000e+00> : vector<128xf32>
      %36 = vector.multi_reduction <add>, %32, %cst_20 [0] : vector<128x128xf32> to vector<128xf32>
      %37 = vector.shape_cast %36 : vector<128xf32> to vector<1x128xf32>
      %38 = arith.addf %35, %37 : vector<1x128xf32>
      %c0_21 = arith.constant 0 : index
      %c0_22 = arith.constant 0 : index
      %39 = vector.load %arg15[%c0_21, %c0_22] : memref<2x128xf32, #tpu.memory_space<vmem>>, vector<1x128xf32>
      tpu.vector_store %arg15[%c0_21, %c0_22], %38 {strides = array<i32>} : memref<2x128xf32, #tpu.memory_space<vmem>>, vector<1x128xf32>,
      %c1 = arith.constant 1 : index
      %c0_23 = arith.constant 0 : index
      %40 = vector.load %arg15[%c1, %c0_23] : memref<2x128xf32, #tpu.memory_space<vmem>>, vector<1x128xf32>
      %41 = arith.mulf %32, %32 : vector<128x128xf32>
      %cst_24 = arith.constant dense<0.000000e+00> : vector<128xf32>
      %42 = vector.multi_reduction <add>, %41, %cst_24 [0] : vector<128x128xf32> to vector<128xf32>
      %43 = vector.shape_cast %42 : vector<128xf32> to vector<1x128xf32>
      %44 = arith.addf %40, %43 : vector<1x128xf32>
      %c1_25 = arith.constant 1 : index
      %c0_26 = arith.constant 0 : index
      %45 = vector.load %arg15[%c1_25, %c0_26] : memref<2x128xf32, #tpu.memory_space<vmem>>, vector<1x128xf32>
      tpu.vector_store %arg15[%c1_25, %c0_26], %44 {strides = array<i32>} : memref<2x128xf32, #tpu.memory_space<vmem>>, vector<1x128xf32>,
    } else {
    }
    %c2_i32 = arith.constant 2 : i32
    %13 = arith.cmpi eq, %arg0, %c2_i32 : i32
    %14 = arith.extui %13 : i1 to i32
    %c0_i32_5 = arith.constant 0 : i32
    %15 = arith.cmpi ne, %14, %c0_i32_5 : i32
    scf.if %15 {
      %c0 = arith.constant 0 : index
      %c0_8 = arith.constant 0 : index
      %22 = vector.load %arg15[%c0, %c0_8] : memref<2x128xf32, #tpu.memory_space<vmem>>, vector<1x128xf32>
      %cst = arith.constant 3.906250e-03 : f32
      %23 = vector.broadcast %cst : f32 to vector<1x128xf32>
      %24 = arith.mulf %22, %23 : vector<1x128xf32>
      %c1 = arith.constant 1 : index
      %c0_9 = arith.constant 0 : index
      %25 = vector.load %arg15[%c1, %c0_9] : memref<2x128xf32, #tpu.memory_space<vmem>>, vector<1x128xf32>
      %cst_10 = arith.constant 3.906250e-03 : f32
      %26 = vector.broadcast %cst_10 : f32 to vector<1x128xf32>
      %27 = arith.mulf %25, %26 : vector<1x128xf32>
      %28 = arith.mulf %24, %24 : vector<1x128xf32>
      %29 = arith.subf %27, %28 : vector<1x128xf32>
      %cst_11 = arith.constant 0.000000e+00 : f32
      %30 = vector.broadcast %cst_11 : f32 to vector<1x128xf32>
      %31 = arith.maximumf %29, %30 : vector<1x128xf32>
      %32 = arith.index_cast %1 : i32 to index
      %c0_12 = arith.constant 0 : index
      %33 = vector.load %arg12[%32, %c0_12] : memref<256x128xf32, #tpu.memory_space<vmem>>, vector<128x128xf32>
      %34 = vector.broadcast %24 : vector<1x128xf32> to vector<128x128xf32>
      %35 = arith.subf %33, %34 : vector<128x128xf32>
      %cst_13 = arith.constant 9.99999997E-7 : f32
      %36 = vector.broadcast %cst_13 : f32 to vector<1x128xf32>
      %37 = arith.addf %31, %36 : vector<1x128xf32>
      %38 = math.rsqrt %37 : vector<1x128xf32>
      %39 = vector.broadcast %38 : vector<1x128xf32> to vector<128x128xf32>
      %40 = arith.mulf %35, %39 : vector<128x128xf32>
      %41 = arith.truncf %40 : vector<128x128xf32> to vector<128x128xbf16>
      %c0_14 = arith.constant 0 : index
      %c0_15 = arith.constant 0 : index
      %42 = vector.load %arg6[%c0_14, %c0_15] : memref<128x64xbf16, #tpu.memory_space<vmem>>, vector<128x64xbf16>
      %cst_16 = arith.constant dense<0.000000e+00> : vector<128x64xf32>
      %43 = tpu.matmul %41, %42, %cst_16 {dimension_numbers = #tpu.dot_dimension_numbers<[1], [0], [0], [1], [0, 0, 1, 1], [], []>} : vector<128x128xbf16>, vector<128x64xbf16>, vector<128x64xf32> -> vector<128x64xf32>
      %44 = arith.truncf %43 : vector<128x64xf32> to vector<128x64xbf16>
      %45 = arith.index_cast %1 : i32 to index
      %c0_17 = arith.constant 0 : index
      %46 = vector.load %arg13[%45, %c0_17] : memref<256x64xbf16, #tpu.memory_space<vmem>>, vector<128x64xbf16>
      tpu.vector_store %arg13[%45, %c0_17], %44 {strides = array<i32>} : memref<256x64xbf16, #tpu.memory_space<vmem>>, vector<128x64xbf16>,
    } else {
    }
    %c3_i32 = arith.constant 3 : i32
    %16 = arith.cmpi eq, %arg0, %c3_i32 : i32
    %17 = arith.extui %16 : i1 to i32
    %c0_i32_6 = arith.constant 0 : i32
    %18 = arith.cmpi ne, %17, %c0_i32_6 : i32
    scf.if %18 {
      %22 = arith.index_cast %1 : i32 to index
      %c0 = arith.constant 0 : index
      %23 = vector.load %arg17[%22, %c0] : memref<256x256xbf16, #tpu.memory_space<vmem>>, vector<128x256xbf16>
      %c0_8 = arith.constant 0 : index
      %c0_9 = arith.constant 0 : index
      %24 = vector.load %arg13[%c0_8, %c0_9] : memref<256x64xbf16, #tpu.memory_space<vmem>>, vector<256x64xbf16>
      %cst = arith.constant dense<0.000000e+00> : vector<128x64xf32>
      %25 = tpu.matmul %23, %24, %cst {dimension_numbers = #tpu.dot_dimension_numbers<[1], [0], [0], [1], [0, 0, 1, 1], [], []>} : vector<128x256xbf16>, vector<256x64xbf16>, vector<128x64xf32> -> vector<128x64xf32>
      %c0_10 = arith.constant 0 : index
      %c0_11 = arith.constant 0 : index
      %26 = vector.load %arg7[%c0_10, %c0_11] : memref<1x64xf32, #tpu.memory_space<vmem>>, vector<1x64xf32>
      %27 = vector.broadcast %26 : vector<1x64xf32> to vector<128x64xf32>
      %28 = arith.addf %25, %27 : vector<128x64xf32>
      %cst_12 = arith.constant 0.000000e+00 : f32
      %29 = vector.broadcast %cst_12 : f32 to vector<128x64xf32>
      %30 = arith.maximumf %28, %29 : vector<128x64xf32>
      %31 = arith.index_cast %1 : i32 to index
      %c0_13 = arith.constant 0 : index
      %32 = vector.load %arg14[%31, %c0_13] : memref<256x64xf32, #tpu.memory_space<vmem>>, vector<128x64xf32>
      tpu.vector_store %arg14[%31, %c0_13], %30 {strides = array<i32>} : memref<256x64xf32, #tpu.memory_space<vmem>>, vector<128x64xf32>,
      %c0_14 = arith.constant 0 : index
      %c0_15 = arith.constant 0 : index
      %33 = vector.load %arg16[%c0_14, %c0_15] : memref<2x64xf32, #tpu.memory_space<vmem>>, vector<1x64xf32>
      %cst_16 = arith.constant dense<0.000000e+00> : vector<64xf32>
      %34 = vector.multi_reduction <add>, %30, %cst_16 [0] : vector<128x64xf32> to vector<64xf32>
      %35 = vector.shape_cast %34 : vector<64xf32> to vector<1x64xf32>
      %36 = arith.addf %33, %35 : vector<1x64xf32>
      %c0_17 = arith.constant 0 : index
      %c0_18 = arith.constant 0 : index
      %37 = vector.load %arg16[%c0_17, %c0_18] : memref<2x64xf32, #tpu.memory_space<vmem>>, vector<1x64xf32>
      tpu.vector_store %arg16[%c0_17, %c0_18], %36 {strides = array<i32>} : memref<2x64xf32, #tpu.memory_space<vmem>>, vector<1x64xf32>,
      %c1 = arith.constant 1 : index
      %c0_19 = arith.constant 0 : index
      %38 = vector.load %arg16[%c1, %c0_19] : memref<2x64xf32, #tpu.memory_space<vmem>>, vector<1x64xf32>
      %39 = arith.mulf %30, %30 : vector<128x64xf32>
      %cst_20 = arith.constant dense<0.000000e+00> : vector<64xf32>
      %40 = vector.multi_reduction <add>, %39, %cst_20 [0] : vector<128x64xf32> to vector<64xf32>
      %41 = vector.shape_cast %40 : vector<64xf32> to vector<1x64xf32>
      %42 = arith.addf %38, %41 : vector<1x64xf32>
      %c1_21 = arith.constant 1 : index
      %c0_22 = arith.constant 0 : index
      %43 = vector.load %arg16[%c1_21, %c0_22] : memref<2x64xf32, #tpu.memory_space<vmem>>, vector<1x64xf32>
      tpu.vector_store %arg16[%c1_21, %c0_22], %42 {strides = array<i32>} : memref<2x64xf32, #tpu.memory_space<vmem>>, vector<1x64xf32>,
    } else {
    }
    %c4_i32 = arith.constant 4 : i32
    %19 = arith.cmpi eq, %arg0, %c4_i32 : i32
    %20 = arith.extui %19 : i1 to i32
    %c0_i32_7 = arith.constant 0 : i32
    %21 = arith.cmpi ne, %20, %c0_i32_7 : i32
    scf.if %21 {
      %c0 = arith.constant 0 : index
      %c0_8 = arith.constant 0 : index
      %22 = vector.load %arg16[%c0, %c0_8] : memref<2x64xf32, #tpu.memory_space<vmem>>, vector<1x64xf32>
      %cst = arith.constant 3.906250e-03 : f32
      %23 = vector.broadcast %cst : f32 to vector<1x64xf32>
      %24 = arith.mulf %22, %23 : vector<1x64xf32>
      %c1 = arith.constant 1 : index
      %c0_9 = arith.constant 0 : index
      %25 = vector.load %arg16[%c1, %c0_9] : memref<2x64xf32, #tpu.memory_space<vmem>>, vector<1x64xf32>
      %cst_10 = arith.constant 3.906250e-03 : f32
      %26 = vector.broadcast %cst_10 : f32 to vector<1x64xf32>
      %27 = arith.mulf %25, %26 : vector<1x64xf32>
      %28 = arith.mulf %24, %24 : vector<1x64xf32>
      %29 = arith.subf %27, %28 : vector<1x64xf32>
      %cst_11 = arith.constant 0.000000e+00 : f32
      %30 = vector.broadcast %cst_11 : f32 to vector<1x64xf32>
      %31 = arith.maximumf %29, %30 : vector<1x64xf32>
      %32 = arith.index_cast %1 : i32 to index
      %c0_12 = arith.constant 0 : index
      %33 = vector.load %arg14[%32, %c0_12] : memref<256x64xf32, #tpu.memory_space<vmem>>, vector<128x64xf32>
      %34 = vector.broadcast %24 : vector<1x64xf32> to vector<128x64xf32>
      %35 = arith.subf %33, %34 : vector<128x64xf32>
      %cst_13 = arith.constant 9.99999997E-7 : f32
      %36 = vector.broadcast %cst_13 : f32 to vector<1x64xf32>
      %37 = arith.addf %31, %36 : vector<1x64xf32>
      %38 = math.rsqrt %37 : vector<1x64xf32>
      %39 = vector.broadcast %38 : vector<1x64xf32> to vector<128x64xf32>
      %40 = arith.mulf %35, %39 : vector<128x64xf32>
      %41 = arith.truncf %40 : vector<128x64xf32> to vector<128x64xbf16>
      %c0_14 = arith.constant 0 : index
      %c0_15 = arith.constant 0 : index
      %42 = vector.load %arg8[%c0_14, %c0_15] : memref<64x128xbf16, #tpu.memory_space<vmem>>, vector<64x128xbf16>
      %cst_16 = arith.constant dense<0.000000e+00> : vector<128x128xf32>
      %43 = tpu.matmul %41, %42, %cst_16 {dimension_numbers = #tpu.dot_dimension_numbers<[1], [0], [0], [1], [0, 0, 1, 1], [], []>} : vector<128x64xbf16>, vector<64x128xbf16>, vector<128x128xf32> -> vector<128x128xf32>
      %c0_17 = arith.constant 0 : index
      %c0_18 = arith.constant 0 : index
      %44 = vector.load %arg9[%c0_17, %c0_18] : memref<1x128xf32, #tpu.memory_space<vmem>>, vector<1x128xf32>
      %45 = vector.broadcast %44 : vector<1x128xf32> to vector<128x128xf32>
      %46 = arith.addf %43, %45 : vector<128x128xf32>
      %c0_19 = arith.constant 0 : index
      %c0_20 = arith.constant 0 : index
      %47 = vector.load %arg10[%c0_19, %c0_20] : memref<128x128xf32, #tpu.memory_space<vmem>>, vector<128x128xf32>
      tpu.vector_store %arg10[%c0_19, %c0_20], %46 {strides = array<i32>} : memref<128x128xf32, #tpu.memory_space<vmem>>, vector<128x128xf32>,
    } else {
    }
    return
  }
  func.func @transform_0(%arg0: i32, %arg1: i32) -> (i32, i32) {
    %c0_i32 = arith.constant 0 : i32
    %0 = arith.cmpi eq, %arg0, %c0_i32 : i32
    %c1_i32 = arith.constant 1 : i32
    %1 = arith.select %0, %arg1, %c1_i32 : i32
    %c0_i32_0 = arith.constant 0 : i32
    %c0_i32_1 = arith.constant 0 : i32
    return %1, %c0_i32_0 : i32, i32
  }
  func.func @transform_1(%arg0: i32, %arg1: i32) -> (i32, i32) {
    %c0_i32 = arith.constant 0 : i32
    %0 = arith.cmpi eq, %arg0, %c0_i32 : i32
    %c1_i32 = arith.constant 1 : i32
    %1 = arith.cmpi eq, %arg0, %c1_i32 : i32
    %c1_i32_0 = arith.constant 1 : i32
    %2 = arith.select %1, %arg1, %c1_i32_0 : i32
    %c0_i32_1 = arith.constant 0 : i32
    %3 = arith.select %0, %c0_i32_1, %2 : i32
    %c0_i32_2 = arith.constant 0 : i32
    %c0_i32_3 = arith.constant 0 : i32
    return %3, %c0_i32_2 : i32, i32
  }
  func.func @transform_2(%arg0: i32, %arg1: i32) -> (i32, i32) {
    %c0_i32 = arith.constant 0 : i32
    %c0_i32_0 = arith.constant 0 : i32
    %c0_i32_1 = arith.constant 0 : i32
    return %c0_i32, %c0_i32_0 : i32, i32
  }
  func.func @transform_3(%arg0: i32, %arg1: i32) -> (i32, i32) {
    %c0_i32 = arith.constant 0 : i32
    %c0_i32_0 = arith.constant 0 : i32
    %c0_i32_1 = arith.constant 0 : i32
    return %c0_i32, %c0_i32_0 : i32, i32
  }
  func.func @transform_4(%arg0: i32, %arg1: i32) -> (i32, i32) {
    %c0_i32 = arith.constant 0 : i32
    %c0_i32_0 = arith.constant 0 : i32
    %c0_i32_1 = arith.constant 0 : i32
    return %c0_i32, %c0_i32_0 : i32, i32
  }
  func.func @transform_5(%arg0: i32, %arg1: i32) -> (i32, i32) {
    %c0_i32 = arith.constant 0 : i32
    %c0_i32_0 = arith.constant 0 : i32
    %c0_i32_1 = arith.constant 0 : i32
    return %c0_i32, %c0_i32_0 : i32, i32
  }
  func.func @transform_6(%arg0: i32, %arg1: i32) -> (i32, i32) {
    %c0_i32 = arith.constant 0 : i32
    %c0_i32_0 = arith.constant 0 : i32
    %c0_i32_1 = arith.constant 0 : i32
    return %c0_i32, %c0_i32_0 : i32, i32
  }
  func.func @transform_7(%arg0: i32, %arg1: i32) -> (i32, i32) {
    %c0_i32 = arith.constant 0 : i32
    %c0_i32_0 = arith.constant 0 : i32
    %c0_i32_1 = arith.constant 0 : i32
    return %c0_i32, %c0_i32_0 : i32, i32
  }
  func.func @transform_8(%arg0: i32, %arg1: i32) -> (i32, i32) {
    %c4_i32 = arith.constant 4 : i32
    %0 = arith.cmpi eq, %arg0, %c4_i32 : i32
    %c0_i32 = arith.constant 0 : i32
    %1 = arith.select %0, %arg1, %c0_i32 : i32
    %c0_i32_0 = arith.constant 0 : i32
    %c0_i32_1 = arith.constant 0 : i32
    return %1, %c0_i32_0 : i32, i32
  }
}

</mosaic_0001>

<llo_original>
// kernel: tpu_custom_call.1
$region0: #{tpu_custom_call.1}
  #allocation0 [shape = 'u32[]', space=smem, size = 0x4, offset = 0x4, fixed_abs, tag = 'smem constant byte address 0x4 - core index']
  #allocation1 [shape = 'u32[72,128]{1,0:T(1,128)}', space=vmem, size = 0x9000, scoped, tag = 'internal scratch']
  #allocation2 [shape = 'bf16[256,128]{1,0:T(8,128)(2,1)}', space=vmem, size = 0x10000, scoped, tag = 'scratch operand']
  #allocation3 [shape = 'f32[256,128]{1,0:T(8,128)}', space=vmem, size = 0x20000, scoped, tag = 'scratch operand']
  #allocation4 [shape = 'bf16[256,64]{1,0:T(8,128)(2,1)}', space=vmem, size = 0x10000, scoped, tag = 'scratch operand']
  #allocation5 [shape = 'f32[256,64]{1,0:T(8,128)}', space=vmem, size = 0x20000, scoped, tag = 'scratch operand']
  #allocation6 [shape = 'f32[2,128]{1,0:T(2,128)}', space=vmem, size = 0x400, scoped, tag = 'scratch operand']
  #allocation7 [shape = 'f32[2,64]{1,0:T(2,128)}', space=vmem, size = 0x400, scoped, tag = 'scratch operand']
  #allocation8 [shape = 'bf16[256,256]{1,0:T(8,128)(2,1)}', space=vmem, size = 0x20000, scoped, tag = 'scratch operand']
  %s0 = inlined_call_operand.vmem [shape: bf16[256,96], index: 0, kind: input, shape index: {}]
  %s1 = inlined_call_operand.vmem [shape: bf16[256,256], index: 1, kind: input, shape index: {}]
  %s2 = inlined_call_operand.vmem [shape: bf16[96,128], index: 2, kind: input, shape index: {}]
  %s3 = inlined_call_operand.vmem [shape: f32[1,128], index: 3, kind: input, shape index: {}]
  %s4 = inlined_call_operand.vmem [shape: bf16[128,64], index: 4, kind: input, shape index: {}]
  %s5 = inlined_call_operand.vmem [shape: f32[1,64], index: 5, kind: input, shape index: {}]
  %s6 = inlined_call_operand.hbm [shape: bf16[64,128], index: 6, kind: input, shape index: {}]
  %s7 = inlined_call_operand.vmem [shape: f32[1,128], index: 7, kind: input, shape index: {}]
  %s8 = inlined_call_operand.hbm [shape: f32[256,128], index: 8, kind: output, shape index: {}]
  %s9 = sld [smem:[#allocation0]]
  $region93: #{tpu_custom_call.1} parent=0
    _
  %s11 = ssub.s32 1, %s9
  %s12 = scalar_select 0, %s11, %s9
  $region1: #{tpu_custom_call.1} parent=0
    #allocation9 [shape = 'u8[16384]{0}', space=vmem, size = 0x4000, scoped, tag = 'input window, operand 6, single buffered']
    #allocation10 [shape = 's32[2]{0}', space=sflag, size = 0x8, scoped, tag = 'scoped memory for tpu_custom_call.1']
    #allocation11 [shape = 's32[2]{0}', space=sflag, size = 0x8, scoped, tag = 'scoped memory for tpu_custom_call.1']
    #allocation12 [shape = 'u8[131072]{0}', space=vmem, size = 0x20000, scoped, tag = 'output window, operand 0']
    %13 = vsyncpa [#allocation10], 0
    %14 = vsyncpa [#allocation11], 0
    %s15 = scalar_lea.sflag [#allocation11], 1
    %16 = vsyncpa %s15, 0
    loop: start=0, step=1, limit=12
    $region2: #{tpu_custom_call.1} parent=1 // loop_pre_header
      _
    $region3: #{tpu_custom_call.1} parent=1 // loop_header
      %s18 = sphi 0, %s22
      %p19 = scmp.ge.s32.totalorder %s18, 12
      %s25 = sphi 0, %s37
      %s26 = sphi 0, %s33
      %s27 = sphi 0, %s25
      %s28 = sphi 0, %s26
      %s29 = sphi 0, %s27
      %s30 = sphi 0, %s28
      %s44 = sphi 0, %s46
      %s47 = sphi 0, %s44
      %s48 = sphi 0, %s47
      %s64 = sphi 0, %s48
      %s78 = sphi 0, %s80
      %s81 = sphi 0, %s78
      %s82 = sphi 0, %s81
      %s98 = sphi 0, %s82
      %s102 = sphi 0, %s102
      %s104 = sphi 0, %s102
      %s105 = sphi 0, %s104
      %s119 = sphi 0, %s105
      %s123 = sphi 0, %s123
      %s125 = sphi 0, %s123
      %s126 = sphi 0, %s125
      %s140 = sphi 0, %s126
      %s144 = sphi 0, %s144
      %s146 = sphi 0, %s144
      %s147 = sphi 0, %s146
      %s161 = sphi 0, %s147
      %s165 = sphi 0, %s165
      %s167 = sphi 0, %s165
      %s168 = sphi 0, %s167
      %s182 = sphi 0, %s168
      %s186 = sphi 0, %s186
      %s188 = sphi 0, %s186
      %s189 = sphi 0, %s188
      %s203 = sphi 0, %s189
      %s207 = sphi 0, %s207
      %s209 = sphi 0, %s207
      %s210 = sphi 0, %s209
      %s224 = sphi 0, %s210
      %s234 = sphi 0, %s236
      %s237 = sphi 0, %s234
      %s238 = sphi 0, %s237
      %s254 = sphi 0, %s238
    $region4: #{tpu_custom_call.1} parent=1 // loop_header_branch
      %21 = sbr.rel (%p19) target = $region8
    $region5: #{tpu_custom_call.1} parent=1 // loop_body
      %s23 = ssub.s32 %s18, 1
      %s24 = ssub.s32 %s18, 2
      %s31 = sadd.s32 1, %s26
      %p32 = scmp.ge.s32.totalorder %s31, 2
      %s33 = scalar_select %p32, 0, %s31
      %s34 = sadd.s32 1, %s25
      %s35 = scalar_select %p32, %s34, %s25
      %p36 = scmp.ge.s32.totalorder %s35, 5
      %s37 = scalar_select %p36, 0, %s35
      %p38 = scmp.eq.s32.totalorder %s25, 0
      %s39 = scalar_select %p38, %s26, 1
      %p40 = scmp.eq.s32.totalorder %s37, 0
      %s41 = scalar_select %p40, %s33, 1
      %s42 = ssub.s32 %s39, %s41
      %p43 = scmp.eq.s32.totalorder %s42, 0
      %s45 = sadd.s32 %s44, 1
      %s46 = scalar_select %p43, %s44, %s45
      %p49 = pneg %p43
      %p50 = scmp.eq.s32.totalorder %s18, 9
      %p51 = por %p49, %p50
      %p52 = scmp.ne.s32.totalorder %s44, %s47
      %p53 = scmp.eq.s32.totalorder %s18, 0
      %p54 = por %p52, %p53
      %p55 = scmp.ne.s32.totalorder %s44, %s47
      %p56 = scmp.eq.s32.totalorder %s23, 9
      %p57 = por %p55, %p56
      %p58 = scmp.ne.s32.totalorder %s47, %s48
      %p59 = scmp.eq.s32.totalorder %s23, 0
      %p60 = por %p58, %p59
      %p61 = scmp.ne.s32.totalorder %s47, %s48
      %p62 = scmp.eq.s32.totalorder %s24, 9
      %p63 = por %p61, %p62
      %p65 = scmp.ne.s32.totalorder %s48, %s64
      %p66 = scmp.eq.s32.totalorder %s24, 0
      %p67 = por %p65, %p66
      %p68 = scmp.eq.s32.totalorder %s25, 0
      %p69 = scmp.eq.s32.totalorder %s25, 1
      %s70 = scalar_select %p69, %s26, 1
      %s71 = scalar_select %p68, 0, %s70
      %p72 = scmp.eq.s32.totalorder %s37, 0
      %p73 = scmp.eq.s32.totalorder %s37, 1
      %s74 = scalar_select %p73, %s33, 1
      %s75 = scalar_select %p72, 0, %s74
      %s76 = ssub.s32 %s71, %s75
      %p77 = scmp.eq.s32.totalorder %s76, 0
      %s79 = sadd.s32 %s78, 1
      %s80 = scalar_select %p77, %s78, %s79
      %p83 = pneg %p77
      %p84 = scmp.eq.s32.totalorder %s18, 9
      %p85 = por %p83, %p84
      %p86 = scmp.ne.s32.totalorder %s78, %s81
      %p87 = scmp.eq.s32.totalorder %s18, 0
      %p88 = por %p86, %p87
      %p89 = scmp.ne.s32.totalorder %s78, %s81
      %p90 = scmp.eq.s32.totalorder %s23, 9
      %p91 = por %p89, %p90
      %p92 = scmp.ne.s32.totalorder %s81, %s82
      %p93 = scmp.eq.s32.totalorder %s23, 0
      %p94 = por %p92, %p93
      %p95 = scmp.ne.s32.totalorder %s81, %s82
      %p96 = scmp.eq.s32.totalorder %s24, 9
      %p97 = por %p95, %p96
      %p99 = scmp.ne.s32.totalorder %s82, %s98
      %p100 = scmp.eq.s32.totalorder %s24, 0
      %p101 = por %p99, %p100
      %s103 = sadd.s32 %s102, 1
      %p106 = scmp.eq.s32.totalorder %s18, 9
      %p107 = scmp.ne.s32.totalorder %s102, %s104
      %p108 = scmp.eq.s32.totalorder %s18, 0
      %p109 = por %p107, %p108
      %p110 = scmp.ne.s32.totalorder %s102, %s104
      %p111 = scmp.eq.s32.totalorder %s23, 9
      %p112 = por %p110, %p111
      %p113 = scmp.ne.s32.totalorder %s104, %s105
      %p114 = scmp.eq.s32.totalorder %s23, 0
      %p115 = por %p113, %p114
      %p116 = scmp.ne.s32.totalorder %s104, %s105
      %p117 = scmp.eq.s32.totalorder %s24, 9
      %p118 = por %p116, %p117
      %p120 = scmp.ne.s32.totalorder %s105, %s119
      %p121 = scmp.eq.s32.totalorder %s24, 0
      %p122 = por %p120, %p121
      %s124 = sadd.s32 %s123, 1
      %p127 = scmp.eq.s32.totalorder %s18, 9
      %p128 = scmp.ne.s32.totalorder %s123, %s125
      %p129 = scmp.eq.s32.totalorder %s18, 0
      %p130 = por %p128, %p129
      %p131 = scmp.ne.s32.totalorder %s123, %s125
      %p132 = scmp.eq.s32.totalorder %s23, 9
      %p133 = por %p131, %p132
      %p134 = scmp.ne.s32.totalorder %s125, %s126
      %p135 = scmp.eq.s32.totalorder %s23, 0
      %p136 = por %p134, %p135
      %p137 = scmp.ne.s32.totalorder %s125, %s126
      %p138 = scmp.eq.s32.totalorder %s24, 9
      %p139 = por %p137, %p138
      %p141 = scmp.ne.s32.totalorder %s126, %s140
      %p142 = scmp.eq.s32.totalorder %s24, 0
      %p143 = por %p141, %p142
      %s145 = sadd.s32 %s144, 1
      %p148 = scmp.eq.s32.totalorder %s18, 9
      %p149 = scmp.ne.s32.totalorder %s144, %s146
      %p150 = scmp.eq.s32.totalorder %s18, 0
      %p151 = por %p149, %p150
      %p152 = scmp.ne.s32.totalorder %s144, %s146
      %p153 = scmp.eq.s32.totalorder %s23, 9
      %p154 = por %p152, %p153
      %p155 = scmp.ne.s32.totalorder %s146, %s147
      %p156 = scmp.eq.s32.totalorder %s23, 0
      %p157 = por %p155, %p156
      %p158 = scmp.ne.s32.totalorder %s146, %s147
      %p159 = scmp.eq.s32.totalorder %s24, 9
      %p160 = por %p158, %p159
      %p162 = scmp.ne.s32.totalorder %s147, %s161
      %p163 = scmp.eq.s32.totalorder %s24, 0
      %p164 = por %p162, %p163
      %s166 = sadd.s32 %s165, 1
      %p169 = scmp.eq.s32.totalorder %s18, 9
      %p170 = scmp.ne.s32.totalorder %s165, %s167
      %p171 = scmp.eq.s32.totalorder %s18, 0
      %p172 = por %p170, %p171
      %p173 = scmp.ne.s32.totalorder %s165, %s167
      %p174 = scmp.eq.s32.totalorder %s23, 9
      %p175 = por %p173, %p174
      %p176 = scmp.ne.s32.totalorder %s167, %s168
      %p177 = scmp.eq.s32.totalorder %s23, 0
      %p178 = por %p176, %p177
      %p179 = scmp.ne.s32.totalorder %s167, %s168
      %p180 = scmp.eq.s32.totalorder %s24, 9
      %p181 = por %p179, %p180
      %p183 = scmp.ne.s32.totalorder %s168, %s182
      %p184 = scmp.eq.s32.totalorder %s24, 0
      %p185 = por %p183, %p184
      %s187 = sadd.s32 %s186, 1
      %p190 = scmp.eq.s32.totalorder %s18, 9
      %p191 = scmp.ne.s32.totalorder %s186, %s188
      %p192 = scmp.eq.s32.totalorder %s18, 0
      %p193 = por %p191, %p192
      %p194 = scmp.ne.s32.totalorder %s186, %s188
      %p195 = scmp.eq.s32.totalorder %s23, 9
      %p196 = por %p194, %p195
      %p197 = scmp.ne.s32.totalorder %s188, %s189
      %p198 = scmp.eq.s32.totalorder %s23, 0
      %p199 = por %p197, %p198
      %p200 = scmp.ne.s32.totalorder %s188, %s189
      %p201 = scmp.eq.s32.totalorder %s24, 9
      %p202 = por %p200, %p201
      %p204 = scmp.ne.s32.totalorder %s189, %s203
      %p205 = scmp.eq.s32.totalorder %s24, 0
      %p206 = por %p204, %p205
      %s208 = sadd.s32 %s207, 1
      %p211 = scmp.eq.s32.totalorder %s18, 9
      %p212 = scmp.ne.s32.totalorder %s207, %s209
      %p213 = scmp.eq.s32.totalorder %s18, 0
      %p214 = por %p212, %p213
      %p215 = scmp.ne.s32.totalorder %s207, %s209
      %p216 = scmp.eq.s32.totalorder %s23, 9
      %p217 = por %p215, %p216
      %p218 = scmp.ne.s32.totalorder %s209, %s210
      %p219 = scmp.eq.s32.totalorder %s23, 0
      %p220 = por %p218, %p219
      %p221 = scmp.ne.s32.totalorder %s209, %s210
      %p222 = scmp.eq.s32.totalorder %s24, 9
      %p223 = por %p221, %p222
      %p225 = scmp.ne.s32.totalorder %s210, %s224
      %p226 = scmp.eq.s32.totalorder %s24, 0
      %p227 = por %p225, %p226
      %p228 = scmp.eq.s32.totalorder %s25, 4
      %s229 = scalar_select %p228, %s26, 0
      %p230 = scmp.eq.s32.totalorder %s37, 4
      %s231 = scalar_select %p230, %s33, 0
      %s232 = ssub.s32 %s229, %s231
      %p233 = scmp.eq.s32.totalorder %s232, 0
      %s235 = sadd.s32 %s234, 1
      %s236 = scalar_select %p233, %s234, %s235
      %p239 = pneg %p233
      %p240 = scmp.eq.s32.totalorder %s18, 9
      %p241 = por %p239, %p240
      %p242 = scmp.ne.s32.totalorder %s234, %s237
      %p243 = scmp.eq.s32.totalorder %s18, 0
      %p244 = por %p242, %p243
      %p245 = scmp.ne.s32.totalorder %s234, %s237
      %p246 = scmp.eq.s32.totalorder %s23, 9
      %p247 = por %p245, %p246
      %p248 = scmp.ne.s32.totalorder %s237, %s238
      %p249 = scmp.eq.s32.totalorder %s23, 0
      %p250 = por %p248, %p249
      %p251 = scmp.ne.s32.totalorder %s237, %s238
      %p252 = scmp.eq.s32.totalorder %s24, 9
      %p253 = por %p251, %p252
      %p255 = scmp.ne.s32.totalorder %s238, %s254
      %p256 = scmp.eq.s32.totalorder %s24, 0
      %p257 = por %p255, %p256
      %p258 = scmp.le.s32.totalorder 1, %s18
      %p259 = scmp.lt.s32.totalorder %s18, 11
      %p260 = pnand %p258, %p259
      %p261 = pneg %p260
      // Predicated region
      $region9: #{tpu_custom_call.1} parent=5 // pred_check
        _
      $region10: #{tpu_custom_call.1} parent=5 // pred_check_branch
        %263 = sbr.rel (%p260) target = $region12
      $region11: #{tpu_custom_call.1} parent=5 // pred_region
        %s264 = ssub.s32 %s18, 1
        // Predicated region
        $region13: #{tpu_custom_call.1} parent=11 // pred_check
          %p265 = pneg %p115
        $region14: #{tpu_custom_call.1} parent=11 // pred_check_branch
          %267 = sbr.rel (%p265) target = $region16
        $region15: #{tpu_custom_call.1} parent=11 // pred_region
          _
        $region16: #{tpu_custom_call.1} parent=11 // pred_fallthru
          _
        // Predicated region
        $region17: #{tpu_custom_call.1} parent=11 // pred_check
          %p268 = pneg %p136
        $region18: #{tpu_custom_call.1} parent=11 // pred_check_branch
          %270 = sbr.rel (%p268) target = $region20
        $region19: #{tpu_custom_call.1} parent=11 // pred_region
          _
        $region20: #{tpu_custom_call.1} parent=11 // pred_fallthru
          _
        // Predicated region
        $region21: #{tpu_custom_call.1} parent=11 // pred_check
          %p271 = pneg %p157
        $region22: #{tpu_custom_call.1} parent=11 // pred_check_branch
          %273 = sbr.rel (%p271) target = $region24
        $region23: #{tpu_custom_call.1} parent=11 // pred_region
          _
        $region24: #{tpu_custom_call.1} parent=11 // pred_fallthru
          _
        // Predicated region
        $region25: #{tpu_custom_call.1} parent=11 // pred_check
          %p274 = pneg %p178
        $region26: #{tpu_custom_call.1} parent=11 // pred_check_branch
          %276 = sbr.rel (%p274) target = $region28
        $region27: #{tpu_custom_call.1} parent=11 // pred_region
          _
        $region28: #{tpu_custom_call.1} parent=11 // pred_fallthru
          _
        // Predicated region
        $region29: #{tpu_custom_call.1} parent=11 // pred_check
          %p277 = pneg %p199
        $region30: #{tpu_custom_call.1} parent=11 // pred_check_branch
          %279 = sbr.rel (%p277) target = $region32
        $region31: #{tpu_custom_call.1} parent=11 // pred_region
          %281 = vsyncadd [#allocation10], 0
          %s282 = sshll.u32 %s6, 4
          %s283 = int_to_ptr.hbm [resolvable:$true] %s282
          %s284 = sshll.u32 [#allocation9], 4
          %s285 = int_to_ptr.vmem [resolvable:$true] %s284
          %290 = dma.hbm_to_vmem [thread:$0]  %s283, 512, %s285, [#allocation10], 64, 64, 4
        $region32: #{tpu_custom_call.1} parent=11 // pred_fallthru
          _
        // Predicated region
        $region33: #{tpu_custom_call.1} parent=11 // pred_check
          %p291 = pneg %p220
        $region34: #{tpu_custom_call.1} parent=11 // pred_check_branch
          %293 = sbr.rel (%p291) target = $region36
        $region35: #{tpu_custom_call.1} parent=11 // pred_region
          _
        $region36: #{tpu_custom_call.1} parent=11 // pred_fallthru
          _
      $region12: #{tpu_custom_call.1} parent=5 // pred_fallthru
        _
      %p294 = scmp.lt.s32.totalorder %s18, 10
      // Predicated region
      $region37: #{tpu_custom_call.1} parent=5 // pred_check
        %p295 = pneg %p294
      $region38: #{tpu_custom_call.1} parent=5 // pred_check_branch
        %297 = sbr.rel (%p295) target = $region40
      $region39: #{tpu_custom_call.1} parent=5 // pred_region
        // Predicated region
        $region41: #{tpu_custom_call.1} parent=39 // pred_check
          %p298 = pneg %p54
        $region42: #{tpu_custom_call.1} parent=39 // pred_check_branch
          %300 = sbr.rel (%p298) target = $region44
        $region43: #{tpu_custom_call.1} parent=39 // pred_region
          %p301 = scmp.eq.s32.totalorder %s25, 0
          %s302 = scalar_select %p301, %s26, 1
          %s303 = smul.u32 16, %s302
          %p304 = scmp.lt.s32.totalorder %s303, 31
          %s305 = scalar_select %p304, %s303, 31
          %s306 = smul.addr %s305, 4
          %s307 = scalar_lea.vmem %s0, %s306
          %p308 = scmp.eq.s32.totalorder %s25, 0
          %s309 = scalar_select %p308, %s26, 1
          %s310 = smul.u32 16, %s309
        $region44: #{tpu_custom_call.1} parent=39 // pred_fallthru
          _
        // Predicated region
        $region45: #{tpu_custom_call.1} parent=39 // pred_check
          %p311 = pneg %p88
        $region46: #{tpu_custom_call.1} parent=39 // pred_check_branch
          %313 = sbr.rel (%p311) target = $region48
        $region47: #{tpu_custom_call.1} parent=39 // pred_region
          %p314 = scmp.eq.s32.totalorder %s25, 0
          %p315 = scmp.eq.s32.totalorder %s25, 1
          %s316 = scalar_select %p315, %s26, 1
          %s317 = scalar_select %p314, 0, %s316
          %s318 = smul.u32 16, %s317
          %p319 = scmp.lt.s32.totalorder %s318, 31
          %s320 = scalar_select %p319, %s318, 31
          %s321 = smul.addr %s320, 2
          %s322 = smul.addr %s321, 4
          %s323 = scalar_lea.vmem %s1, %s322
          %p324 = scmp.eq.s32.totalorder %s25, 0
          %p325 = scmp.eq.s32.totalorder %s25, 1
          %s326 = scalar_select %p325, %s26, 1
          %s327 = scalar_select %p324, 0, %s326
          %s328 = smul.u32 16, %s327
        $region48: #{tpu_custom_call.1} parent=39 // pred_fallthru
          _
      $region40: #{tpu_custom_call.1} parent=5 // pred_fallthru
        _
      %p329 = scmp.le.s32.totalorder 1, %s18
      %p330 = scmp.lt.s32.totalorder %s18, 11
      %p331 = pnand %p329, %p330
      %p332 = pneg %p331
      // Predicated region
      $region49: #{tpu_custom_call.1} parent=5 // pred_check
        _
      $region50: #{tpu_custom_call.1} parent=5 // pred_check_branch
        %334 = sbr.rel (%p331) target = $region52
      $region51: #{tpu_custom_call.1} parent=5 // pred_region
        %s335 = ssub.s32 %s18, 1
        // Predicated region
        $region53: #{tpu_custom_call.1} parent=51 // pred_check
          %p336 = pneg %p199
        $region54: #{tpu_custom_call.1} parent=51 // pred_check_branch
          %338 = sbr.rel (%p336) target = $region56
        $region55: #{tpu_custom_call.1} parent=51 // pred_region
          %340 = dma.done [#allocation10], 512
        $region56: #{tpu_custom_call.1} parent=51 // pred_fallthru
          _
        %p341 = scmp.eq.s32.totalorder %s27, 0
        %s342 = scalar_select %p341, %s28, 1
        %s343 = smul.u32 16, %s342
        %p344 = scmp.lt.s32.totalorder %s343, 31
        %s345 = scalar_select %p344, %s343, 31
        %s346 = smul.addr %s345, 4
        %s347 = scalar_lea.vmem %s0, %s346
        %p348 = pneg %p60
        %p349 = pneg %p57
        %p350 = scmp.eq.s32.totalorder %s27, 0
        %p351 = scmp.eq.s32.totalorder %s27, 1
        %s352 = scalar_select %p351, %s28, 1
        %s353 = scalar_select %p350, 0, %s352
        %s354 = smul.u32 16, %s353
        %p355 = scmp.lt.s32.totalorder %s354, 31
        %s356 = scalar_select %p355, %s354, 31
        %s357 = smul.addr %s356, 2
        %s358 = smul.addr %s357, 4
        %s359 = scalar_lea.vmem %s1, %s358
        %p360 = pneg %p94
        %p361 = pneg %p91
        %p362 = pneg %p115
        %p363 = pneg %p112
        %p364 = pneg %p136
        %p365 = pneg %p133
        %p366 = pneg %p157
        %p367 = pneg %p154
        %p368 = pneg %p178
        %p369 = pneg %p175
        %p370 = pneg %p199
        %p371 = pneg %p196
        %p372 = pneg %p220
        %p373 = pneg %p217
        %p374 = pneg %p250
        %p375 = pneg %p247
        %s376 = sand.u32 %s237, 1
        %s377 = scalar_lea.sflag [#allocation11], %s376
        %s378 = sand.u32 %s237, 1
        %s379 = smul.addr %s378, 128
        %s380 = scalar_lea.vmem [#allocation12], %s379
        %p381 = scmp.eq.s32.totalorder %s27, 0
        %s382 = scalar_select %p381, %s28, 1
        %s383 = smul.u32 16, %s382
        %p384 = scmp.lt.s32.totalorder %s383, 31
        %s385 = scalar_select %p384, %s383, 31
        %s386 = smul.addr %s385, 4
        %s387 = scalar_lea.vmem %s0, %s386
        %p388 = scmp.eq.s32.totalorder %s27, 0
        %s389 = scalar_select %p388, %s28, 1
        %s390 = smul.u32 16, %s389
        %p391 = scmp.eq.s32.totalorder %s27, 0
        %p392 = scmp.eq.s32.totalorder %s27, 1
        %s393 = scalar_select %p392, %s28, 1
        %s394 = scalar_select %p391, 0, %s393
        %s395 = smul.u32 16, %s394
        %p396 = scmp.lt.s32.totalorder %s395, 31
        %s397 = scalar_select %p396, %s395, 31
        %s398 = smul.addr %s397, 2
        %s399 = smul.addr %s398, 4
        %s400 = scalar_lea.vmem %s1, %s399
        %p401 = scmp.eq.s32.totalorder %s27, 0
        %p402 = scmp.eq.s32.totalorder %s27, 1
        %s403 = scalar_select %p402, %s28, 1
        %s404 = scalar_select %p401, 0, %s403
        %s405 = smul.u32 16, %s404
        %p406 = scmp.eq.s32.totalorder %s27, 4
        %s407 = scalar_select %p406, %s28, 0
        %s408 = smul.u32 16, %s407
        %s410 = smul.u32 %s28, 128
        %p411 = scmp.eq.s32.totalorder %s27, 0
        %p412 = scmp.eq.s32.totalorder %s28, 0
        %p413 = pnand %p411, %p412
        %p414 = pneg %p413
        // Predicated region
        $region57: #{tpu_custom_call.1} parent=51 // pred_check
          _
        $region58: #{tpu_custom_call.1} parent=51 // pred_check_branch
          %416 = sbr.rel (%p413) target = $region60
        $region59: #{tpu_custom_call.1} parent=51 // pred_region
          %417 = vst [vmem:[#allocation6] sm:$0x3] 0.0
          %vm418 = vcmask 517120
          %419 = vst.msk [vmem:[#allocation7] sm:$0x3] %vm418, 0.0
        $region60: #{tpu_custom_call.1} parent=51 // pred_fallthru
          _
        // Predicated region
        $region61: #{tpu_custom_call.1} parent=51 // pred_check
          %p420 = pneg %p411
        $region62: #{tpu_custom_call.1} parent=51 // pred_check_branch
          %422 = sbr.rel (%p420) target = $region64
        $region63: #{tpu_custom_call.1} parent=51 // pred_region
          %v423 = vld [vmem:[%s387] sm:$0xf]
          %v424 = vld [vmem:[%s387 + $0x4] sm:$0xf]
          %v425 = vld [vmem:[%s387 + $0x8] sm:$0xf]
          %v426 = vld [vmem:[%s387 + $0xc] sm:$0xf]
          %v427 = vld [vmem:[%s387 + $0x10] sm:$0xf]
          %v428 = vld [vmem:[%s387 + $0x14] sm:$0xf]
          %v429 = vld [vmem:[%s387 + $0x18] sm:$0xf]
          %v430 = vld [vmem:[%s387 + $0x1c] sm:$0xf]
          %v431 = vld [vmem:[%s387 + $0x20] sm:$0xf]
          %v432 = vld [vmem:[%s387 + $0x24] sm:$0xf]
          %v433 = vld [vmem:[%s387 + $0x28] sm:$0xf]
          %v434 = vld [vmem:[%s387 + $0x2c] sm:$0xf]
          %v435 = vld [vmem:[%s387 + $0x30] sm:$0xf]
          %v436 = vld [vmem:[%s387 + $0x34] sm:$0xf]
          %v437 = vld [vmem:[%s387 + $0x38] sm:$0xf]
          %v438 = vld [vmem:[%s387 + $0x3c] sm:$0xf]
          %v439 = vld [vmem:[%s2] sm:$0xf]
          %v440 = vld [vmem:[%s2 + $0x4] sm:$0xf]
          %v441 = vld [vmem:[%s2 + $0x8] sm:$0xf]
          %v442 = vld [vmem:[%s2 + $0xc] sm:$0xf]
          %v443 = vld [vmem:[%s2 + $0x10] sm:$0xf]
          %v444 = vld [vmem:[%s2 + $0x14] sm:$0xf]
          %v445 = vld [vmem:[%s2 + $0x18] sm:$0xf]
          %v446 = vld [vmem:[%s2 + $0x1c] sm:$0xf]
          %v447 = vld [vmem:[%s2 + $0x20] sm:$0xf]
          %v448 = vld [vmem:[%s2 + $0x24] sm:$0xf]
          %v449 = vld [vmem:[%s2 + $0x28] sm:$0xf]
          %v450 = vld [vmem:[%s2 + $0x2c] sm:$0xf]
          %v467 = vunpack.c.l.b16 %v423
          %v468 = vunpack.c.l.b16 %v424
          %v469 = vunpack.c.l.b16 %v425
          %v470 = vunpack.c.l.b16 %v426
          %v471 = vunpack.c.l.b16 %v427
          %v472 = vunpack.c.l.b16 %v428
          %v473 = vunpack.c.l.b16 %v429
          %v474 = vunpack.c.l.b16 %v430
          %v475 = vunpack.c.l.b16 %v431
          %v476 = vunpack.c.l.b16 %v432
          %v477 = vunpack.c.l.b16 %v433
          %v478 = vunpack.c.l.b16 %v434
          %v479 = vunpack.c.l.b16 %v435
          %v480 = vunpack.c.l.b16 %v436
          %v481 = vunpack.c.l.b16 %v437
          %v482 = vunpack.c.l.b16 %v438
          %v483 = vpack.c.b16 %v468, %v467
          %v484 = vpack.c.b16 %v470, %v469
          %v485 = vpack.c.b16 %v472, %v471
          %v486 = vpack.c.b16 %v474, %v473
          %v487 = vpack.c.b16 %v476, %v475
          %v488 = vpack.c.b16 %v478, %v477
          %v489 = vpack.c.b16 %v480, %v479
          %v490 = vpack.c.b16 %v482, %v481
          %v503 = vunpack.c.l.b16 %v439
          %v504 = vunpack.c.l.b16 %v440
          %v505 = vunpack.c.l.b16 %v441
          %v506 = vunpack.c.l.b16 %v442
          %v507 = vunpack.c.l.b16 %v443
          %v508 = vunpack.c.l.b16 %v444
          %v509 = vunpack.c.l.b16 %v445
          %v510 = vunpack.c.l.b16 %v446
          %v511 = vunpack.c.l.b16 %v447
          %v512 = vunpack.c.l.b16 %v448
          %v513 = vunpack.c.l.b16 %v449
          %v514 = vunpack.c.l.b16 %v450
          %v515 = vpack.c.b16 %v504, %v503
          %v516 = vpack.c.b16 %v506, %v505
          %v517 = vpack.c.b16 %v508, %v507
          %v518 = vpack.c.b16 %v510, %v509
          %v519 = vpack.c.b16 %v512, %v511
          %v520 = vpack.c.b16 %v514, %v513
          %vm527 = vcmask 785408
          %v529 = vsel %vm527, %v483, 0
          %v532 = vsel %vm527, %v484, 0
          %v535 = vsel %vm527, %v485, 0
          %v538 = vsel %vm527, %v486, 0
          %v541 = vsel %vm527, %v487, 0
          %v544 = vsel %vm527, %v488, 0
          %v547 = vsel %vm527, %v489, 0
          %v550 = vsel %vm527, %v490, 0
          %552 = vmatpush.bf16.msra.mxu0 0
          %553 = vmatpush.bf16.msra.mxu0 0
          %554 = vmatpush.bf16.msra.mxu0 %v520
          %555 = vmatpush.bf16.msra.mxu0 %v519
          %556 = vmatpush.bf16.msra.mxu0 %v518
          %557 = vmatpush.bf16.msra.mxu0 %v517
          %558 = vmatpush.bf16.msra.mxu0 %v516
          %559 = vmatpush.bf16.msra.mxu0 %v515
          %560 = vmatmul.bf16.gmra.mxu0 %v529
          %v561 = vpop.f32.mrf.mxu0
          %v562 = vadd.f32 0.0, %v561
          %v563 = vpop.f32.mrf.mxu0
          %v564 = vadd.f32 0.0, %v563
          %565 = vmatmul.bf16.gmra.mxu0 %v532
          %v566 = vpop.f32.mrf.mxu0
          %v567 = vadd.f32 0.0, %v566
          %v568 = vpop.f32.mrf.mxu0
          %v569 = vadd.f32 0.0, %v568
          %570 = vmatmul.bf16.gmra.mxu0 %v535
          %v571 = vpop.f32.mrf.mxu0
          %v572 = vadd.f32 0.0, %v571
          %v573 = vpop.f32.mrf.mxu0
          %v574 = vadd.f32 0.0, %v573
          %575 = vmatmul.bf16.gmra.mxu0 %v538
          %v576 = vpop.f32.mrf.mxu0
          %v577 = vadd.f32 0.0, %v576
          %v578 = vpop.f32.mrf.mxu0
          %v579 = vadd.f32 0.0, %v578
          %580 = vmatmul.bf16.gmra.mxu0 %v541
          %v581 = vpop.f32.mrf.mxu0
          %v582 = vadd.f32 0.0, %v581
          %v583 = vpop.f32.mrf.mxu0
          %v584 = vadd.f32 0.0, %v583
          %585 = vmatmul.bf16.gmra.mxu0 %v544
          %v586 = vpop.f32.mrf.mxu0
          %v587 = vadd.f32 0.0, %v586
          %v588 = vpop.f32.mrf.mxu0
          %v589 = vadd.f32 0.0, %v588
          %590 = vmatmul.bf16.gmra.mxu0 %v547
          %v591 = vpop.f32.mrf.mxu0
          %v592 = vadd.f32 0.0, %v591
          %v593 = vpop.f32.mrf.mxu0
          %v594 = vadd.f32 0.0, %v593
          %595 = vmatmul.bf16.gmra.mxu0 %v550
          %v596 = vpop.f32.mrf.mxu0
          %v597 = vadd.f32 0.0, %v596
          %v598 = vpop.f32.mrf.mxu0
          %v599 = vadd.f32 0.0, %v598
          %600 = vdwg.mxu0
          %v601 = vpack.c.bf16 %v562, %v562
          %v602 = vpack.c.bf16 %v564, %v564
          %v603 = vpack.c.bf16 %v567, %v567
          %v604 = vpack.c.bf16 %v569, %v569
          %v605 = vpack.c.bf16 %v572, %v572
          %v606 = vpack.c.bf16 %v574, %v574
          %v607 = vpack.c.bf16 %v577, %v577
          %v608 = vpack.c.bf16 %v579, %v579
          %v609 = vpack.c.bf16 %v582, %v582
          %v610 = vpack.c.bf16 %v584, %v584
          %v611 = vpack.c.bf16 %v587, %v587
          %v612 = vpack.c.bf16 %v589, %v589
          %v613 = vpack.c.bf16 %v592, %v592
          %v614 = vpack.c.bf16 %v594, %v594
          %v615 = vpack.c.bf16 %v597, %v597
          %v616 = vpack.c.bf16 %v599, %v599
          %s617 = sshra.s32 %s410, 3
          %s618 = sand.u32 %s410, 7
          %s619 = smul.addr %s617, 4
          %s620 = scalar_lea.vmem [#allocation2], %s619
          %621 = vst [vmem:[%s620] sm:$0xf] %v601
          %622 = vst [vmem:[%s620 + $0x4] sm:$0xf] %v602
          %623 = vst [vmem:[%s620 + $0x8] sm:$0xf] %v603
          %624 = vst [vmem:[%s620 + $0xc] sm:$0xf] %v604
          %625 = vst [vmem:[%s620 + $0x10] sm:$0xf] %v605
          %626 = vst [vmem:[%s620 + $0x14] sm:$0xf] %v606
          %627 = vst [vmem:[%s620 + $0x18] sm:$0xf] %v607
          %628 = vst [vmem:[%s620 + $0x1c] sm:$0xf] %v608
          %629 = vst [vmem:[%s620 + $0x20] sm:$0xf] %v609
          %630 = vst [vmem:[%s620 + $0x24] sm:$0xf] %v610
          %631 = vst [vmem:[%s620 + $0x28] sm:$0xf] %v611
          %632 = vst [vmem:[%s620 + $0x2c] sm:$0xf] %v612
          %633 = vst [vmem:[%s620 + $0x30] sm:$0xf] %v613
          %634 = vst [vmem:[%s620 + $0x34] sm:$0xf] %v614
          %635 = vst [vmem:[%s620 + $0x38] sm:$0xf] %v615
          %636 = vst [vmem:[%s620 + $0x3c] sm:$0xf] %v616
        $region64: #{tpu_custom_call.1} parent=51 // pred_fallthru
          _
        %p637 = scmp.eq.s32.totalorder %s27, 1
        // Predicated region
        $region65: #{tpu_custom_call.1} parent=51 // pred_check
          %p638 = pneg %p637
        $region66: #{tpu_custom_call.1} parent=51 // pred_check_branch
          %640 = sbr.rel (%p638) target = $region68
        $region67: #{tpu_custom_call.1} parent=51 // pred_region
          %v641 = vld [vmem:[%s400] sm:$0xff]
          %v642 = vld [vmem:[%s400 + $0x8] sm:$0xff]
          %v643 = vld [vmem:[%s400 + $0x10] sm:$0xff]
          %v644 = vld [vmem:[%s400 + $0x18] sm:$0xff]
          %v645 = vld [vmem:[%s400 + $0x20] sm:$0xff]
          %v646 = vld [vmem:[%s400 + $0x28] sm:$0xff]
          %v647 = vld [vmem:[%s400 + $0x30] sm:$0xff]
          %v648 = vld [vmem:[%s400 + $0x38] sm:$0xff]
          %v649 = vld [vmem:[%s400 + $0x40] sm:$0xff]
          %v650 = vld [vmem:[%s400 + $0x48] sm:$0xff]
          %v651 = vld [vmem:[%s400 + $0x50] sm:$0xff]
          %v652 = vld [vmem:[%s400 + $0x58] sm:$0xff]
          %v653 = vld [vmem:[%s400 + $0x60] sm:$0xff]
          %v654 = vld [vmem:[%s400 + $0x68] sm:$0xff]
          %v655 = vld [vmem:[%s400 + $0x70] sm:$0xff]
          %v656 = vld [vmem:[%s400 + $0x78] sm:$0xff]
          %s657 = sshra.s32 %s410, 3
          %s658 = sand.u32 %s410, 7
          %s659 = smul.u32 %s657, 2
          %s660 = smul.addr %s659, 4
          %s661 = scalar_lea.vmem [#allocation8], %s660
          %662 = vst [vmem:[%s661] sm:$0xff] %v641
          %663 = vst [vmem:[%s661 + $0x8] sm:$0xff] %v642
          %664 = vst [vmem:[%s661 + $0x10] sm:$0xff] %v643
          %665 = vst [vmem:[%s661 + $0x18] sm:$0xff] %v644
          %666 = vst [vmem:[%s661 + $0x20] sm:$0xff] %v645
          %667 = vst [vmem:[%s661 + $0x28] sm:$0xff] %v646
          %668 = vst [vmem:[%s661 + $0x30] sm:$0xff] %v647
          %669 = vst [vmem:[%s661 + $0x38] sm:$0xff] %v648
          %670 = vst [vmem:[%s661 + $0x40] sm:$0xff] %v649
          %671 = vst [vmem:[%s661 + $0x48] sm:$0xff] %v650
          %672 = vst [vmem:[%s661 + $0x50] sm:$0xff] %v651
          %673 = vst [vmem:[%s661 + $0x58] sm:$0xff] %v652
          %674 = vst [vmem:[%s661 + $0x60] sm:$0xff] %v653
          %675 = vst [vmem:[%s661 + $0x68] sm:$0xff] %v654
          %676 = vst [vmem:[%s661 + $0x70] sm:$0xff] %v655
          %677 = vst [vmem:[%s661 + $0x78] sm:$0xff] %v656
          %v678 = vld [vmem:[%s400] sm:$0xff]
          %v679 = vld [vmem:[%s400 + $0x8] sm:$0xff]
          %v680 = vld [vmem:[%s400 + $0x10] sm:$0xff]
          %v681 = vld [vmem:[%s400 + $0x18] sm:$0xff]
          %v682 = vld [vmem:[%s400 + $0x20] sm:$0xff]
          %v683 = vld [vmem:[%s400 + $0x28] sm:$0xff]
          %v684 = vld [vmem:[%s400 + $0x30] sm:$0xff]
          %v685 = vld [vmem:[%s400 + $0x38] sm:$0xff]
          %v686 = vld [vmem:[%s400 + $0x40] sm:$0xff]
          %v687 = vld [vmem:[%s400 + $0x48] sm:$0xff]
          %v688 = vld [vmem:[%s400 + $0x50] sm:$0xff]
          %v689 = vld [vmem:[%s400 + $0x58] sm:$0xff]
          %v690 = vld [vmem:[%s400 + $0x60] sm:$0xff]
          %v691 = vld [vmem:[%s400 + $0x68] sm:$0xff]
          %v692 = vld [vmem:[%s400 + $0x70] sm:$0xff]
          %v693 = vld [vmem:[%s400 + $0x78] sm:$0xff]
          %v694 = vld [vmem:[#allocation2] sm:$0xf]
          %v695 = vld [vmem:[#allocation2 + $0x4] sm:$0xf]
          %v696 = vld [vmem:[#allocation2 + $0x8] sm:$0xf]
          %v697 = vld [vmem:[#allocation2 + $0xc] sm:$0xf]
          %v698 = vld [vmem:[#allocation2 + $0x10] sm:$0xf]
          %v699 = vld [vmem:[#allocation2 + $0x14] sm:$0xf]
          %v700 = vld [vmem:[#allocation2 + $0x18] sm:$0xf]
          %v701 = vld [vmem:[#allocation2 + $0x1c] sm:$0xf]
          %v702 = vld [vmem:[#allocation2 + $0x20] sm:$0xf]
          %v703 = vld [vmem:[#allocation2 + $0x24] sm:$0xf]
          %v704 = vld [vmem:[#allocation2 + $0x28] sm:$0xf]
          %v705 = vld [vmem:[#allocation2 + $0x2c] sm:$0xf]
          %v706 = vld [vmem:[#allocation2 + $0x30] sm:$0xf]
          %v707 = vld [vmem:[#allocation2 + $0x34] sm:$0xf]
          %v708 = vld [vmem:[#allocation2 + $0x38] sm:$0xf]
          %v709 = vld [vmem:[#allocation2 + $0x3c] sm:$0xf]
          %v710 = vld [vmem:[#allocation2 + $0x40] sm:$0xf]
          %v711 = vld [vmem:[#allocation2 + $0x44] sm:$0xf]
          %v712 = vld [vmem:[#allocation2 + $0x48] sm:$0xf]
          %v713 = vld [vmem:[#allocation2 + $0x4c] sm:$0xf]
          %v714 = vld [vmem:[#allocation2 + $0x50] sm:$0xf]
          %v715 = vld [vmem:[#allocation2 + $0x54] sm:$0xf]
          %v716 = vld [vmem:[#allocation2 + $0x58] sm:$0xf]
          %v717 = vld [vmem:[#allocation2 + $0x5c] sm:$0xf]
          %v718 = vld [vmem:[#allocation2 + $0x60] sm:$0xf]
          %v719 = vld [vmem:[#allocation2 + $0x64] sm:$0xf]
          %v720 = vld [vmem:[#allocation2 + $0x68] sm:$0xf]
          %v721 = vld [vmem:[#allocation2 + $0x6c] sm:$0xf]
          %v722 = vld [vmem:[#allocation2 + $0x70] sm:$0xf]
          %v723 = vld [vmem:[#allocation2 + $0x74] sm:$0xf]
          %v724 = vld [vmem:[#allocation2 + $0x78] sm:$0xf]
          %v725 = vld [vmem:[#allocation2 + $0x7c] sm:$0xf]
          %v726 = vld [vmem:[%s3] sm:$0x1]
          %v728 = vperm.slane %v726, 0
          %v746 = vunpack.c.l.b16 %v678
          %v747 = vunpack.c.h.b16 %v678
          %v748 = vunpack.c.l.b16 %v679
          %v749 = vunpack.c.h.b16 %v679
          %v750 = vunpack.c.l.b16 %v680
          %v751 = vunpack.c.h.b16 %v680
          %v752 = vunpack.c.l.b16 %v681
          %v753 = vunpack.c.h.b16 %v681
          %v754 = vunpack.c.l.b16 %v682
          %v755 = vunpack.c.h.b16 %v682
          %v756 = vunpack.c.l.b16 %v683
          %v757 = vunpack.c.h.b16 %v683
          %v758 = vunpack.c.l.b16 %v684
          %v759 = vunpack.c.h.b16 %v684
          %v760 = vunpack.c.l.b16 %v685
          %v761 = vunpack.c.h.b16 %v685
          %v762 = vunpack.c.l.b16 %v686
          %v763 = vunpack.c.h.b16 %v686
          %v764 = vunpack.c.l.b16 %v687
          %v765 = vunpack.c.h.b16 %v687
          %v766 = vunpack.c.l.b16 %v688
          %v767 = vunpack.c.h.b16 %v688
          %v768 = vunpack.c.l.b16 %v689
          %v769 = vunpack.c.h.b16 %v689
          %v770 = vunpack.c.l.b16 %v690
          %v771 = vunpack.c.h.b16 %v690
          %v772 = vunpack.c.l.b16 %v691
          %v773 = vunpack.c.h.b16 %v691
          %v774 = vunpack.c.l.b16 %v692
          %v775 = vunpack.c.h.b16 %v692
          %v776 = vunpack.c.l.b16 %v693
          %v777 = vunpack.c.h.b16 %v693
          %v778 = vpack.c.b16 %v748, %v746
          %v779 = vpack.c.b16 %v749, %v747
          %v780 = vpack.c.b16 %v752, %v750
          %v781 = vpack.c.b16 %v753, %v751
          %v782 = vpack.c.b16 %v756, %v754
          %v783 = vpack.c.b16 %v757, %v755
          %v784 = vpack.c.b16 %v760, %v758
          %v785 = vpack.c.b16 %v761, %v759
          %v786 = vpack.c.b16 %v764, %v762
          %v787 = vpack.c.b16 %v765, %v763
          %v788 = vpack.c.b16 %v768, %v766
          %v789 = vpack.c.b16 %v769, %v767
          %v790 = vpack.c.b16 %v772, %v770
          %v791 = vpack.c.b16 %v773, %v771
          %v792 = vpack.c.b16 %v776, %v774
          %v793 = vpack.c.b16 %v777, %v775
          %v842 = vunpack.c.l.b16 %v694
          %v843 = vunpack.c.l.b16 %v695
          %v844 = vunpack.c.l.b16 %v696
          %v845 = vunpack.c.l.b16 %v697
          %v846 = vunpack.c.l.b16 %v698
          %v847 = vunpack.c.l.b16 %v699
          %v848 = vunpack.c.l.b16 %v700
          %v849 = vunpack.c.l.b16 %v701
          %v850 = vunpack.c.l.b16 %v702
          %v851 = vunpack.c.l.b16 %v703
          %v852 = vunpack.c.l.b16 %v704
          %v853 = vunpack.c.l.b16 %v705
          %v854 = vunpack.c.l.b16 %v706
          %v855 = vunpack.c.l.b16 %v707
          %v856 = vunpack.c.l.b16 %v708
          %v857 = vunpack.c.l.b16 %v709
          %v858 = vunpack.c.l.b16 %v710
          %v859 = vunpack.c.l.b16 %v711
          %v860 = vunpack.c.l.b16 %v712
          %v861 = vunpack.c.l.b16 %v713
          %v862 = vunpack.c.l.b16 %v714
          %v863 = vunpack.c.l.b16 %v715
          %v864 = vunpack.c.l.b16 %v716
          %v865 = vunpack.c.l.b16 %v717
          %v866 = vunpack.c.l.b16 %v718
          %v867 = vunpack.c.l.b16 %v719
          %v868 = vunpack.c.l.b16 %v720
          %v869 = vunpack.c.l.b16 %v721
          %v870 = vunpack.c.l.b16 %v722
          %v871 = vunpack.c.l.b16 %v723
          %v872 = vunpack.c.l.b16 %v724
          %v873 = vunpack.c.l.b16 %v725
          %v874 = vpack.c.b16 %v843, %v842
          %v875 = vpack.c.b16 %v845, %v844
          %v876 = vpack.c.b16 %v847, %v846
          %v877 = vpack.c.b16 %v849, %v848
          %v878 = vpack.c.b16 %v851, %v850
          %v879 = vpack.c.b16 %v853, %v852
          %v880 = vpack.c.b16 %v855, %v854
          %v881 = vpack.c.b16 %v857, %v856
          %v882 = vpack.c.b16 %v859, %v858
          %v883 = vpack.c.b16 %v861, %v860
          %v884 = vpack.c.b16 %v863, %v862
          %v885 = vpack.c.b16 %v865, %v864
          %v886 = vpack.c.b16 %v867, %v866
          %v887 = vpack.c.b16 %v869, %v868
          %v888 = vpack.c.b16 %v871, %v870
          %v889 = vpack.c.b16 %v873, %v872
          %906 = vmatpush.bf16.msra.mxu0 %v881
          %907 = vmatpush.bf16.msra.mxu0 %v880
          %908 = vmatpush.bf16.msra.mxu0 %v879
          %909 = vmatpush.bf16.msra.mxu0 %v878
          %910 = vmatpush.bf16.msra.mxu0 %v877
          %911 = vmatpush.bf16.msra.mxu0 %v876
          %912 = vmatpush.bf16.msra.mxu0 %v875
          %913 = vmatpush.bf16.msra.mxu0 %v874
          %914 = vmatmul.bf16.gmra.mxu0 %v778
          %v915 = vpop.f32.mrf.mxu0
          %v916 = vadd.f32 %v728, %v915
          %v917 = vpop.f32.mrf.mxu0
          %v918 = vadd.f32 %v728, %v917
          %919 = vmatmul.bf16.gmra.mxu0 %v780
          %v920 = vpop.f32.mrf.mxu0
          %v921 = vadd.f32 %v728, %v920
          %v922 = vpop.f32.mrf.mxu0
          %v923 = vadd.f32 %v728, %v922
          %924 = vmatmul.bf16.gmra.mxu0 %v782
          %v925 = vpop.f32.mrf.mxu0
          %v926 = vadd.f32 %v728, %v925
          %v927 = vpop.f32.mrf.mxu0
          %v928 = vadd.f32 %v728, %v927
          %929 = vmatmul.bf16.gmra.mxu0 %v784
          %v930 = vpop.f32.mrf.mxu0
          %v931 = vadd.f32 %v728, %v930
          %v932 = vpop.f32.mrf.mxu0
          %v933 = vadd.f32 %v728, %v932
          %934 = vmatmul.bf16.gmra.mxu0 %v786
          %v935 = vpop.f32.mrf.mxu0
          %v936 = vadd.f32 %v728, %v935
          %v937 = vpop.f32.mrf.mxu0
          %v938 = vadd.f32 %v728, %v937
          %939 = vmatmul.bf16.gmra.mxu0 %v788
          %v940 = vpop.f32.mrf.mxu0
          %v941 = vadd.f32 %v728, %v940
          %v942 = vpop.f32.mrf.mxu0
          %v943 = vadd.f32 %v728, %v942
          %944 = vmatmul.bf16.gmra.mxu0 %v790
          %v945 = vpop.f32.mrf.mxu0
          %v946 = vadd.f32 %v728, %v945
          %v947 = vpop.f32.mrf.mxu0
          %v948 = vadd.f32 %v728, %v947
          %949 = vmatmul.bf16.gmra.mxu0 %v792
          %v950 = vpop.f32.mrf.mxu0
          %v951 = vadd.f32 %v728, %v950
          %v952 = vpop.f32.mrf.mxu0
          %v953 = vadd.f32 %v728, %v952
          %954 = vdwg.mxu0
          %955 = vmatpush.bf16.msra.mxu0 %v889
          %956 = vmatpush.bf16.msra.mxu0 %v888
          %957 = vmatpush.bf16.msra.mxu0 %v887
          %958 = vmatpush.bf16.msra.mxu0 %v886
          %959 = vmatpush.bf16.msra.mxu0 %v885
          %960 = vmatpush.bf16.msra.mxu0 %v884
          %961 = vmatpush.bf16.msra.mxu0 %v883
          %962 = vmatpush.bf16.msra.mxu0 %v882
          %963 = vmatmul.bf16.gmra.mxu0 %v779
          %v964 = vpop.f32.mrf.mxu0
          %v965 = vadd.f32 %v916, %v964
          %v966 = vpop.f32.mrf.mxu0
          %v967 = vadd.f32 %v918, %v966
          %968 = vmatmul.bf16.gmra.mxu0 %v781
          %v969 = vpop.f32.mrf.mxu0
          %v970 = vadd.f32 %v921, %v969
          %v971 = vpop.f32.mrf.mxu0
          %v972 = vadd.f32 %v923, %v971
          %973 = vmatmul.bf16.gmra.mxu0 %v783
          %v974 = vpop.f32.mrf.mxu0
          %v975 = vadd.f32 %v926, %v974
          %v976 = vpop.f32.mrf.mxu0
          %v977 = vadd.f32 %v928, %v976
          %978 = vmatmul.bf16.gmra.mxu0 %v785
          %v979 = vpop.f32.mrf.mxu0
          %v980 = vadd.f32 %v931, %v979
          %v981 = vpop.f32.mrf.mxu0
          %v982 = vadd.f32 %v933, %v981
          %983 = vmatmul.bf16.gmra.mxu0 %v787
          %v984 = vpop.f32.mrf.mxu0
          %v985 = vadd.f32 %v936, %v984
          %v986 = vpop.f32.mrf.mxu0
          %v987 = vadd.f32 %v938, %v986
          %988 = vmatmul.bf16.gmra.mxu0 %v789
          %v989 = vpop.f32.mrf.mxu0
          %v990 = vadd.f32 %v941, %v989
          %v991 = vpop.f32.mrf.mxu0
          %v992 = vadd.f32 %v943, %v991
          %993 = vmatmul.bf16.gmra.mxu0 %v791
          %v994 = vpop.f32.mrf.mxu0
          %v995 = vadd.f32 %v946, %v994
          %v996 = vpop.f32.mrf.mxu0
          %v997 = vadd.f32 %v948, %v996
          %998 = vmatmul.bf16.gmra.mxu0 %v793
          %v999 = vpop.f32.mrf.mxu0
          %v1000 = vadd.f32 %v951, %v999
          %v1001 = vpop.f32.mrf.mxu0
          %v1002 = vadd.f32 %v953, %v1001
          %1003 = vdwg.mxu0
          %v1004 = vmax.f32 %v965, 0.0
          %v1005 = vmax.f32 %v967, 0.0
          %v1006 = vmax.f32 %v970, 0.0
          %v1007 = vmax.f32 %v972, 0.0
          %v1008 = vmax.f32 %v975, 0.0
          %v1009 = vmax.f32 %v977, 0.0
          %v1010 = vmax.f32 %v980, 0.0
          %v1011 = vmax.f32 %v982, 0.0
          %v1012 = vmax.f32 %v985, 0.0
          %v1013 = vmax.f32 %v987, 0.0
          %v1014 = vmax.f32 %v990, 0.0
          %v1015 = vmax.f32 %v992, 0.0
          %v1016 = vmax.f32 %v995, 0.0
          %v1017 = vmax.f32 %v997, 0.0
          %v1018 = vmax.f32 %v1000, 0.0
          %v1019 = vmax.f32 %v1002, 0.0
          %s1020 = scalar_lea.vmem [#allocation3], %s410
          %1021 = vst [vmem:[%s1020] sm:$0xff] %v1004
          %1022 = vst [vmem:[%s1020 + $0x8] sm:$0xff] %v1005
          %1023 = vst [vmem:[%s1020 + $0x10] sm:$0xff] %v1006
          %1024 = vst [vmem:[%s1020 + $0x18] sm:$0xff] %v1007
          %1025 = vst [vmem:[%s1020 + $0x20] sm:$0xff] %v1008
          %1026 = vst [vmem:[%s1020 + $0x28] sm:$0xff] %v1009
          %1027 = vst [vmem:[%s1020 + $0x30] sm:$0xff] %v1010
          %1028 = vst [vmem:[%s1020 + $0x38] sm:$0xff] %v1011
          %1029 = vst [vmem:[%s1020 + $0x40] sm:$0xff] %v1012
          %1030 = vst [vmem:[%s1020 + $0x48] sm:$0xff] %v1013
          %1031 = vst [vmem:[%s1020 + $0x50] sm:$0xff] %v1014
          %1032 = vst [vmem:[%s1020 + $0x58] sm:$0xff] %v1015
          %1033 = vst [vmem:[%s1020 + $0x60] sm:$0xff] %v1016
          %1034 = vst [vmem:[%s1020 + $0x68] sm:$0xff] %v1017
          %1035 = vst [vmem:[%s1020 + $0x70] sm:$0xff] %v1018
          %1036 = vst [vmem:[%s1020 + $0x78] sm:$0xff] %v1019
          %v1037 = vld [vmem:[#allocation6] sm:$0x1]
          %v1038 = vadd.f32 %v1004, %v1005
          %v1039 = vadd.f32 %v1038, %v1006
          %v1040 = vadd.f32 %v1039, %v1007
          %v1041 = vadd.f32 %v1040, %v1008
          %v1042 = vadd.f32 %v1041, %v1009
          %v1043 = vadd.f32 %v1042, %v1010
          %v1044 = vadd.f32 %v1043, %v1011
          %v1045 = vadd.f32 %v1044, %v1012
          %v1046 = vadd.f32 %v1045, %v1013
          %v1047 = vadd.f32 %v1046, %v1014
          %v1048 = vadd.f32 %v1047, %v1015
          %v1049 = vadd.f32 %v1048, %v1016
          %v1050 = vadd.f32 %v1049, %v1017
          %v1051 = vadd.f32 %v1050, %v1018
          %v1052 = vadd.f32 %v1051, %v1019
          %v1053 = vrot.slane %v1052, 4
          %v1054 = vadd.f32 %v1052, %v1053
          %v1055 = vrot.slane %v1054, 2
          %v1056 = vadd.f32 %v1054, %v1055
          %v1057 = vrot.slane %v1056, 1
          %v1058 = vadd.f32 %v1056, %v1057
          %v1059 = vadd.f32 %v1037, %v1058
          %1060 = vst [vmem:[#allocation6] sm:$0x1] %v1059
          %v1061 = vld [vmem:[#allocation6 + $0x1] sm:$0x1]
          %v1062 = vmul.f32 %v1004, %v1004
          %v1063 = vmul.f32 %v1005, %v1005
          %v1064 = vmul.f32 %v1006, %v1006
          %v1065 = vmul.f32 %v1007, %v1007
          %v1066 = vmul.f32 %v1008, %v1008
          %v1067 = vmul.f32 %v1009, %v1009
          %v1068 = vmul.f32 %v1010, %v1010
          %v1069 = vmul.f32 %v1011, %v1011
          %v1070 = vmul.f32 %v1012, %v1012
          %v1071 = vmul.f32 %v1013, %v1013
          %v1072 = vmul.f32 %v1014, %v1014
          %v1073 = vmul.f32 %v1015, %v1015
          %v1074 = vmul.f32 %v1016, %v1016
          %v1075 = vmul.f32 %v1017, %v1017
          %v1076 = vmul.f32 %v1018, %v1018
          %v1077 = vmul.f32 %v1019, %v1019
          %v1078 = vadd.f32 %v1062, %v1063
          %v1079 = vadd.f32 %v1078, %v1064
          %v1080 = vadd.f32 %v1079, %v1065
          %v1081 = vadd.f32 %v1080, %v1066
          %v1082 = vadd.f32 %v1081, %v1067
          %v1083 = vadd.f32 %v1082, %v1068
          %v1084 = vadd.f32 %v1083, %v1069
          %v1085 = vadd.f32 %v1084, %v1070
          %v1086 = vadd.f32 %v1085, %v1071
          %v1087 = vadd.f32 %v1086, %v1072
          %v1088 = vadd.f32 %v1087, %v1073
          %v1089 = vadd.f32 %v1088, %v1074
          %v1090 = vadd.f32 %v1089, %v1075
          %v1091 = vadd.f32 %v1090, %v1076
          %v1092 = vadd.f32 %v1091, %v1077
          %v1093 = vrot.slane %v1092, 4
          %v1094 = vadd.f32 %v1092, %v1093
          %v1095 = vrot.slane %v1094, 2
          %v1096 = vadd.f32 %v1094, %v1095
          %v1097 = vrot.slane %v1096, 1
          %v1098 = vadd.f32 %v1096, %v1097
          %v1099 = vadd.f32 %v1061, %v1098
          %1100 = vst [vmem:[#allocation6 + $0x1] sm:$0x1] %v1099
        $region68: #{tpu_custom_call.1} parent=51 // pred_fallthru
          _
        %p1101 = scmp.eq.s32.totalorder %s27, 2
        // Predicated region
        $region69: #{tpu_custom_call.1} parent=51 // pred_check
          %p1102 = pneg %p1101
        $region70: #{tpu_custom_call.1} parent=51 // pred_check_branch
          %1104 = sbr.rel (%p1102) target = $region72
        $region71: #{tpu_custom_call.1} parent=51 // pred_region
          %v1105 = vld [vmem:[#allocation6] sm:$0x1]
          %v1106 = vmul.f32 %v1105, 0.00390625
          %v1107 = vld [vmem:[#allocation6 + $0x1] sm:$0x1]
          %v1108 = vmul.f32 %v1107, 0.00390625
          %v1109 = vmul.f32 %v1106, %v1106
          %v1110 = vsub.f32 %v1108, %v1109
          %v1111 = vmax.f32 %v1110, 0.0
          %s1112 = scalar_lea.vmem [#allocation3], %s410
          %v1113 = vld [vmem:[%s1112] sm:$0xff]
          %v1114 = vld [vmem:[%s1112 + $0x8] sm:$0xff]
          %v1115 = vld [vmem:[%s1112 + $0x10] sm:$0xff]
          %v1116 = vld [vmem:[%s1112 + $0x18] sm:$0xff]
          %v1117 = vld [vmem:[%s1112 + $0x20] sm:$0xff]
          %v1118 = vld [vmem:[%s1112 + $0x28] sm:$0xff]
          %v1119 = vld [vmem:[%s1112 + $0x30] sm:$0xff]
          %v1120 = vld [vmem:[%s1112 + $0x38] sm:$0xff]
          %v1121 = vld [vmem:[%s1112 + $0x40] sm:$0xff]
          %v1122 = vld [vmem:[%s1112 + $0x48] sm:$0xff]
          %v1123 = vld [vmem:[%s1112 + $0x50] sm:$0xff]
          %v1124 = vld [vmem:[%s1112 + $0x58] sm:$0xff]
          %v1125 = vld [vmem:[%s1112 + $0x60] sm:$0xff]
          %v1126 = vld [vmem:[%s1112 + $0x68] sm:$0xff]
          %v1127 = vld [vmem:[%s1112 + $0x70] sm:$0xff]
          %v1128 = vld [vmem:[%s1112 + $0x78] sm:$0xff]
          %v1129 = vperm.slane %v1106, 0
          %v1130 = vsub.f32 %v1113, %v1129
          %v1131 = vsub.f32 %v1114, %v1129
          %v1132 = vsub.f32 %v1115, %v1129
          %v1133 = vsub.f32 %v1116, %v1129
          %v1134 = vsub.f32 %v1117, %v1129
          %v1135 = vsub.f32 %v1118, %v1129
          %v1136 = vsub.f32 %v1119, %v1129
          %v1137 = vsub.f32 %v1120, %v1129
          %v1138 = vsub.f32 %v1121, %v1129
          %v1139 = vsub.f32 %v1122, %v1129
          %v1140 = vsub.f32 %v1123, %v1129
          %v1141 = vsub.f32 %v1124, %v1129
          %v1142 = vsub.f32 %v1125, %v1129
          %v1143 = vsub.f32 %v1126, %v1129
          %v1144 = vsub.f32 %v1127, %v1129
          %v1145 = vsub.f32 %v1128, %v1129
          %v1146 = vadd.f32 %v1111, 1e-06
          %v1147 = vrsqrt.pop %v1146
          %v1148 = vmul.f32 %v1147, %v1146
          %v1149 = vmul.f32 %v1148, %v1147
          %v1150 = vmul.f32 0.5, %v1149
          %v1151 = vsub.f32 1.5, %v1150
          %v1152 = vmul.f32 %v1147, %v1151
          %vm1153 = vweird.f32 %v1146
          %vm1154 = vweird.f32 %v1147
          %vm1155 = vmor %vm1153, %vm1154
          %v1156 = vsel %vm1155, %v1147, %v1152
          %v1157 = vperm.slane %v1156, 0
          %v1158 = vmul.f32 %v1130, %v1157
          %v1159 = vmul.f32 %v1131, %v1157
          %v1160 = vmul.f32 %v1132, %v1157
          %v1161 = vmul.f32 %v1133, %v1157
          %v1162 = vmul.f32 %v1134, %v1157
          %v1163 = vmul.f32 %v1135, %v1157
          %v1164 = vmul.f32 %v1136, %v1157
          %v1165 = vmul.f32 %v1137, %v1157
          %v1166 = vmul.f32 %v1138, %v1157
          %v1167 = vmul.f32 %v1139, %v1157
          %v1168 = vmul.f32 %v1140, %v1157
          %v1169 = vmul.f32 %v1141, %v1157
          %v1170 = vmul.f32 %v1142, %v1157
          %v1171 = vmul.f32 %v1143, %v1157
          %v1172 = vmul.f32 %v1144, %v1157
          %v1173 = vmul.f32 %v1145, %v1157
          %v1174 = vpack.c.bf16 %v1159, %v1158
          %v1175 = vpack.c.bf16 %v1161, %v1160
          %v1176 = vpack.c.bf16 %v1163, %v1162
          %v1177 = vpack.c.bf16 %v1165, %v1164
          %v1178 = vpack.c.bf16 %v1167, %v1166
          %v1179 = vpack.c.bf16 %v1169, %v1168
          %v1180 = vpack.c.bf16 %v1171, %v1170
          %v1181 = vpack.c.bf16 %v1173, %v1172
          %v1182 = vld [vmem:[%s4] sm:$0xf]
          %v1183 = vld [vmem:[%s4 + $0x4] sm:$0xf]
          %v1184 = vld [vmem:[%s4 + $0x8] sm:$0xf]
          %v1185 = vld [vmem:[%s4 + $0xc] sm:$0xf]
          %v1186 = vld [vmem:[%s4 + $0x10] sm:$0xf]
          %v1187 = vld [vmem:[%s4 + $0x14] sm:$0xf]
          %v1188 = vld [vmem:[%s4 + $0x18] sm:$0xf]
          %v1189 = vld [vmem:[%s4 + $0x1c] sm:$0xf]
          %v1190 = vld [vmem:[%s4 + $0x20] sm:$0xf]
          %v1191 = vld [vmem:[%s4 + $0x24] sm:$0xf]
          %v1192 = vld [vmem:[%s4 + $0x28] sm:$0xf]
          %v1193 = vld [vmem:[%s4 + $0x2c] sm:$0xf]
          %v1194 = vld [vmem:[%s4 + $0x30] sm:$0xf]
          %v1195 = vld [vmem:[%s4 + $0x34] sm:$0xf]
          %v1196 = vld [vmem:[%s4 + $0x38] sm:$0xf]
          %v1197 = vld [vmem:[%s4 + $0x3c] sm:$0xf]
          %v1214 = vunpack.c.l.b16 %v1182
          %v1215 = vunpack.c.l.b16 %v1183
          %v1216 = vunpack.c.l.b16 %v1184
          %v1217 = vunpack.c.l.b16 %v1185
          %v1218 = vunpack.c.l.b16 %v1186
          %v1219 = vunpack.c.l.b16 %v1187
          %v1220 = vunpack.c.l.b16 %v1188
          %v1221 = vunpack.c.l.b16 %v1189
          %v1222 = vunpack.c.l.b16 %v1190
          %v1223 = vunpack.c.l.b16 %v1191
          %v1224 = vunpack.c.l.b16 %v1192
          %v1225 = vunpack.c.l.b16 %v1193
          %v1226 = vunpack.c.l.b16 %v1194
          %v1227 = vunpack.c.l.b16 %v1195
          %v1228 = vunpack.c.l.b16 %v1196
          %v1229 = vunpack.c.l.b16 %v1197
          %v1230 = vpack.c.b16 %v1215, %v1214
          %v1231 = vpack.c.b16 %v1217, %v1216
          %v1232 = vpack.c.b16 %v1219, %v1218
          %v1233 = vpack.c.b16 %v1221, %v1220
          %v1234 = vpack.c.b16 %v1223, %v1222
          %v1235 = vpack.c.b16 %v1225, %v1224
          %v1236 = vpack.c.b16 %v1227, %v1226
          %v1237 = vpack.c.b16 %v1229, %v1228
          %1246 = vmatpush.bf16.msra.mxu0 %v1237
          %1247 = vmatpush.bf16.msra.mxu0 %v1236
          %1248 = vmatpush.bf16.msra.mxu0 %v1235
          %1249 = vmatpush.bf16.msra.mxu0 %v1234
          %1250 = vmatpush.bf16.msra.mxu0 %v1233
          %1251 = vmatpush.bf16.msra.mxu0 %v1232
          %1252 = vmatpush.bf16.msra.mxu0 %v1231
          %1253 = vmatpush.bf16.msra.mxu0 %v1230
          %1254 = vmatmul.bf16.gmra.mxu0 %v1174
          %v1255 = vpop.f32.mrf.mxu0
          %v1256 = vadd.f32 0.0, %v1255
          %v1257 = vpop.f32.mrf.mxu0
          %v1258 = vadd.f32 0.0, %v1257
          %1259 = vmatmul.bf16.gmra.mxu0 %v1175
          %v1260 = vpop.f32.mrf.mxu0
          %v1261 = vadd.f32 0.0, %v1260
          %v1262 = vpop.f32.mrf.mxu0
          %v1263 = vadd.f32 0.0, %v1262
          %1264 = vmatmul.bf16.gmra.mxu0 %v1176
          %v1265 = vpop.f32.mrf.mxu0
          %v1266 = vadd.f32 0.0, %v1265
          %v1267 = vpop.f32.mrf.mxu0
          %v1268 = vadd.f32 0.0, %v1267
          %1269 = vmatmul.bf16.gmra.mxu0 %v1177
          %v1270 = vpop.f32.mrf.mxu0
          %v1271 = vadd.f32 0.0, %v1270
          %v1272 = vpop.f32.mrf.mxu0
          %v1273 = vadd.f32 0.0, %v1272
          %1274 = vmatmul.bf16.gmra.mxu0 %v1178
          %v1275 = vpop.f32.mrf.mxu0
          %v1276 = vadd.f32 0.0, %v1275
          %v1277 = vpop.f32.mrf.mxu0
          %v1278 = vadd.f32 0.0, %v1277
          %1279 = vmatmul.bf16.gmra.mxu0 %v1179
          %v1280 = vpop.f32.mrf.mxu0
          %v1281 = vadd.f32 0.0, %v1280
          %v1282 = vpop.f32.mrf.mxu0
          %v1283 = vadd.f32 0.0, %v1282
          %1284 = vmatmul.bf16.gmra.mxu0 %v1180
          %v1285 = vpop.f32.mrf.mxu0
          %v1286 = vadd.f32 0.0, %v1285
          %v1287 = vpop.f32.mrf.mxu0
          %v1288 = vadd.f32 0.0, %v1287
          %1289 = vmatmul.bf16.gmra.mxu0 %v1181
          %v1290 = vpop.f32.mrf.mxu0
          %v1291 = vadd.f32 0.0, %v1290
          %v1292 = vpop.f32.mrf.mxu0
          %v1293 = vadd.f32 0.0, %v1292
          %1294 = vdwg.mxu0
          %v1295 = vpack.c.bf16 %v1256, %v1256
          %v1296 = vpack.c.bf16 %v1258, %v1258
          %v1297 = vpack.c.bf16 %v1261, %v1261
          %v1298 = vpack.c.bf16 %v1263, %v1263
          %v1299 = vpack.c.bf16 %v1266, %v1266
          %v1300 = vpack.c.bf16 %v1268, %v1268
          %v1301 = vpack.c.bf16 %v1271, %v1271
          %v1302 = vpack.c.bf16 %v1273, %v1273
          %v1303 = vpack.c.bf16 %v1276, %v1276
          %v1304 = vpack.c.bf16 %v1278, %v1278
          %v1305 = vpack.c.bf16 %v1281, %v1281
          %v1306 = vpack.c.bf16 %v1283, %v1283
          %v1307 = vpack.c.bf16 %v1286, %v1286
          %v1308 = vpack.c.bf16 %v1288, %v1288
          %v1309 = vpack.c.bf16 %v1291, %v1291
          %v1310 = vpack.c.bf16 %v1293, %v1293
          %s1311 = sshra.s32 %s410, 3
          %s1312 = sand.u32 %s410, 7
          %s1313 = smul.addr %s1311, 4
          %s1314 = scalar_lea.vmem [#allocation4], %s1313
          %vm1315 = vcmask 519168
          %1316 = vst.msk [vmem:[%s1314] sm:$0xf] %vm1315, %v1295
          %1317 = vst.msk [vmem:[%s1314 + $0x4] sm:$0xf] %vm1315, %v1296
          %1318 = vst.msk [vmem:[%s1314 + $0x8] sm:$0xf] %vm1315, %v1297
          %1319 = vst.msk [vmem:[%s1314 + $0xc] sm:$0xf] %vm1315, %v1298
          %1320 = vst.msk [vmem:[%s1314 + $0x10] sm:$0xf] %vm1315, %v1299
          %1321 = vst.msk [vmem:[%s1314 + $0x14] sm:$0xf] %vm1315, %v1300
          %1322 = vst.msk [vmem:[%s1314 + $0x18] sm:$0xf] %vm1315, %v1301
          %1323 = vst.msk [vmem:[%s1314 + $0x1c] sm:$0xf] %vm1315, %v1302
          %1324 = vst.msk [vmem:[%s1314 + $0x20] sm:$0xf] %vm1315, %v1303
          %1325 = vst.msk [vmem:[%s1314 + $0x24] sm:$0xf] %vm1315, %v1304
          %1326 = vst.msk [vmem:[%s1314 + $0x28] sm:$0xf] %vm1315, %v1305
          %1327 = vst.msk [vmem:[%s1314 + $0x2c] sm:$0xf] %vm1315, %v1306
          %1328 = vst.msk [vmem:[%s1314 + $0x30] sm:$0xf] %vm1315, %v1307
          %1329 = vst.msk [vmem:[%s1314 + $0x34] sm:$0xf] %vm1315, %v1308
          %1330 = vst.msk [vmem:[%s1314 + $0x38] sm:$0xf] %vm1315, %v1309
          %1331 = vst.msk [vmem:[%s1314 + $0x3c] sm:$0xf] %vm1315, %v1310
        $region72: #{tpu_custom_call.1} parent=51 // pred_fallthru
          _
        %p1332 = scmp.eq.s32.totalorder %s27, 3
        // Predicated region
        $region73: #{tpu_custom_call.1} parent=51 // pred_check
          %p1333 = pneg %p1332
        $region74: #{tpu_custom_call.1} parent=51 // pred_check_branch
          %1335 = sbr.rel (%p1333) target = $region76
        $region75: #{tpu_custom_call.1} parent=51 // pred_region
          %s1336 = sshra.s32 %s410, 3
          %s1337 = sand.u32 %s410, 7
          %s1338 = smul.u32 %s1336, 2
          %s1339 = smul.addr %s1338, 4
          %s1340 = scalar_lea.vmem [#allocation8], %s1339
          %v1341 = vld [vmem:[%s1340] sm:$0xff]
          %v1342 = vld [vmem:[%s1340 + $0x8] sm:$0xff]
          %v1343 = vld [vmem:[%s1340 + $0x10] sm:$0xff]
          %v1344 = vld [vmem:[%s1340 + $0x18] sm:$0xff]
          %v1345 = vld [vmem:[%s1340 + $0x20] sm:$0xff]
          %v1346 = vld [vmem:[%s1340 + $0x28] sm:$0xff]
          %v1347 = vld [vmem:[%s1340 + $0x30] sm:$0xff]
          %v1348 = vld [vmem:[%s1340 + $0x38] sm:$0xff]
          %v1349 = vld [vmem:[%s1340 + $0x40] sm:$0xff]
          %v1350 = vld [vmem:[%s1340 + $0x48] sm:$0xff]
          %v1351 = vld [vmem:[%s1340 + $0x50] sm:$0xff]
          %v1352 = vld [vmem:[%s1340 + $0x58] sm:$0xff]
          %v1353 = vld [vmem:[%s1340 + $0x60] sm:$0xff]
          %v1354 = vld [vmem:[%s1340 + $0x68] sm:$0xff]
          %v1355 = vld [vmem:[%s1340 + $0x70] sm:$0xff]
          %v1356 = vld [vmem:[%s1340 + $0x78] sm:$0xff]
          %v1357 = vld [vmem:[#allocation4] sm:$0xf]
          %v1358 = vld [vmem:[#allocation4 + $0x4] sm:$0xf]
          %v1359 = vld [vmem:[#allocation4 + $0x8] sm:$0xf]
          %v1360 = vld [vmem:[#allocation4 + $0xc] sm:$0xf]
          %v1361 = vld [vmem:[#allocation4 + $0x10] sm:$0xf]
          %v1362 = vld [vmem:[#allocation4 + $0x14] sm:$0xf]
          %v1363 = vld [vmem:[#allocation4 + $0x18] sm:$0xf]
          %v1364 = vld [vmem:[#allocation4 + $0x1c] sm:$0xf]
          %v1365 = vld [vmem:[#allocation4 + $0x20] sm:$0xf]
          %v1366 = vld [vmem:[#allocation4 + $0x24] sm:$0xf]
          %v1367 = vld [vmem:[#allocation4 + $0x28] sm:$0xf]
          %v1368 = vld [vmem:[#allocation4 + $0x2c] sm:$0xf]
          %v1369 = vld [vmem:[#allocation4 + $0x30] sm:$0xf]
          %v1370 = vld [vmem:[#allocation4 + $0x34] sm:$0xf]
          %v1371 = vld [vmem:[#allocation4 + $0x38] sm:$0xf]
          %v1372 = vld [vmem:[#allocation4 + $0x3c] sm:$0xf]
          %v1373 = vld [vmem:[#allocation4 + $0x40] sm:$0xf]
          %v1374 = vld [vmem:[#allocation4 + $0x44] sm:$0xf]
          %v1375 = vld [vmem:[#allocation4 + $0x48] sm:$0xf]
          %v1376 = vld [vmem:[#allocation4 + $0x4c] sm:$0xf]
          %v1377 = vld [vmem:[#allocation4 + $0x50] sm:$0xf]
          %v1378 = vld [vmem:[#allocation4 + $0x54] sm:$0xf]
          %v1379 = vld [vmem:[#allocation4 + $0x58] sm:$0xf]
          %v1380 = vld [vmem:[#allocation4 + $0x5c] sm:$0xf]
          %v1381 = vld [vmem:[#allocation4 + $0x60] sm:$0xf]
          %v1382 = vld [vmem:[#allocation4 + $0x64] sm:$0xf]
          %v1383 = vld [vmem:[#allocation4 + $0x68] sm:$0xf]
          %v1384 = vld [vmem:[#allocation4 + $0x6c] sm:$0xf]
          %v1385 = vld [vmem:[#allocation4 + $0x70] sm:$0xf]
          %v1386 = vld [vmem:[#allocation4 + $0x74] sm:$0xf]
          %v1387 = vld [vmem:[#allocation4 + $0x78] sm:$0xf]
          %v1388 = vld [vmem:[#allocation4 + $0x7c] sm:$0xf]
          %v1389 = vld [vmem:[%s5] sm:$0x1]
          %v1391 = vperm.slane %v1389, 0
          %v1409 = vunpack.c.l.b16 %v1341
          %v1410 = vunpack.c.h.b16 %v1341
          %v1411 = vunpack.c.l.b16 %v1342
          %v1412 = vunpack.c.h.b16 %v1342
          %v1413 = vunpack.c.l.b16 %v1343
          %v1414 = vunpack.c.h.b16 %v1343
          %v1415 = vunpack.c.l.b16 %v1344
          %v1416 = vunpack.c.h.b16 %v1344
          %v1417 = vunpack.c.l.b16 %v1345
          %v1418 = vunpack.c.h.b16 %v1345
          %v1419 = vunpack.c.l.b16 %v1346
          %v1420 = vunpack.c.h.b16 %v1346
          %v1421 = vunpack.c.l.b16 %v1347
          %v1422 = vunpack.c.h.b16 %v1347
          %v1423 = vunpack.c.l.b16 %v1348
          %v1424 = vunpack.c.h.b16 %v1348
          %v1425 = vunpack.c.l.b16 %v1349
          %v1426 = vunpack.c.h.b16 %v1349
          %v1427 = vunpack.c.l.b16 %v1350
          %v1428 = vunpack.c.h.b16 %v1350
          %v1429 = vunpack.c.l.b16 %v1351
          %v1430 = vunpack.c.h.b16 %v1351
          %v1431 = vunpack.c.l.b16 %v1352
          %v1432 = vunpack.c.h.b16 %v1352
          %v1433 = vunpack.c.l.b16 %v1353
          %v1434 = vunpack.c.h.b16 %v1353
          %v1435 = vunpack.c.l.b16 %v1354
          %v1436 = vunpack.c.h.b16 %v1354
          %v1437 = vunpack.c.l.b16 %v1355
          %v1438 = vunpack.c.h.b16 %v1355
          %v1439 = vunpack.c.l.b16 %v1356
          %v1440 = vunpack.c.h.b16 %v1356
          %v1441 = vpack.c.b16 %v1411, %v1409
          %v1442 = vpack.c.b16 %v1412, %v1410
          %v1443 = vpack.c.b16 %v1415, %v1413
          %v1444 = vpack.c.b16 %v1416, %v1414
          %v1445 = vpack.c.b16 %v1419, %v1417
          %v1446 = vpack.c.b16 %v1420, %v1418
          %v1447 = vpack.c.b16 %v1423, %v1421
          %v1448 = vpack.c.b16 %v1424, %v1422
          %v1449 = vpack.c.b16 %v1427, %v1425
          %v1450 = vpack.c.b16 %v1428, %v1426
          %v1451 = vpack.c.b16 %v1431, %v1429
          %v1452 = vpack.c.b16 %v1432, %v1430
          %v1453 = vpack.c.b16 %v1435, %v1433
          %v1454 = vpack.c.b16 %v1436, %v1434
          %v1455 = vpack.c.b16 %v1439, %v1437
          %v1456 = vpack.c.b16 %v1440, %v1438
          %v1505 = vunpack.c.l.b16 %v1357
          %v1506 = vunpack.c.l.b16 %v1358
          %v1507 = vunpack.c.l.b16 %v1359
          %v1508 = vunpack.c.l.b16 %v1360
          %v1509 = vunpack.c.l.b16 %v1361
          %v1510 = vunpack.c.l.b16 %v1362
          %v1511 = vunpack.c.l.b16 %v1363
          %v1512 = vunpack.c.l.b16 %v1364
          %v1513 = vunpack.c.l.b16 %v1365
          %v1514 = vunpack.c.l.b16 %v1366
          %v1515 = vunpack.c.l.b16 %v1367
          %v1516 = vunpack.c.l.b16 %v1368
          %v1517 = vunpack.c.l.b16 %v1369
          %v1518 = vunpack.c.l.b16 %v1370
          %v1519 = vunpack.c.l.b16 %v1371
          %v1520 = vunpack.c.l.b16 %v1372
          %v1521 = vunpack.c.l.b16 %v1373
          %v1522 = vunpack.c.l.b16 %v1374
          %v1523 = vunpack.c.l.b16 %v1375
          %v1524 = vunpack.c.l.b16 %v1376
          %v1525 = vunpack.c.l.b16 %v1377
          %v1526 = vunpack.c.l.b16 %v1378
          %v1527 = vunpack.c.l.b16 %v1379
          %v1528 = vunpack.c.l.b16 %v1380
          %v1529 = vunpack.c.l.b16 %v1381
          %v1530 = vunpack.c.l.b16 %v1382
          %v1531 = vunpack.c.l.b16 %v1383
          %v1532 = vunpack.c.l.b16 %v1384
          %v1533 = vunpack.c.l.b16 %v1385
          %v1534 = vunpack.c.l.b16 %v1386
          %v1535 = vunpack.c.l.b16 %v1387
          %v1536 = vunpack.c.l.b16 %v1388
          %v1537 = vpack.c.b16 %v1506, %v1505
          %v1538 = vpack.c.b16 %v1508, %v1507
          %v1539 = vpack.c.b16 %v1510, %v1509
          %v1540 = vpack.c.b16 %v1512, %v1511
          %v1541 = vpack.c.b16 %v1514, %v1513
          %v1542 = vpack.c.b16 %v1516, %v1515
          %v1543 = vpack.c.b16 %v1518, %v1517
          %v1544 = vpack.c.b16 %v1520, %v1519
          %v1545 = vpack.c.b16 %v1522, %v1521
          %v1546 = vpack.c.b16 %v1524, %v1523
          %v1547 = vpack.c.b16 %v1526, %v1525
          %v1548 = vpack.c.b16 %v1528, %v1527
          %v1549 = vpack.c.b16 %v1530, %v1529
          %v1550 = vpack.c.b16 %v1532, %v1531
          %v1551 = vpack.c.b16 %v1534, %v1533
          %v1552 = vpack.c.b16 %v1536, %v1535
          %1569 = vmatpush.bf16.msra.mxu0 %v1544
          %1570 = vmatpush.bf16.msra.mxu0 %v1543
          %1571 = vmatpush.bf16.msra.mxu0 %v1542
          %1572 = vmatpush.bf16.msra.mxu0 %v1541
          %1573 = vmatpush.bf16.msra.mxu0 %v1540
          %1574 = vmatpush.bf16.msra.mxu0 %v1539
          %1575 = vmatpush.bf16.msra.mxu0 %v1538
          %1576 = vmatpush.bf16.msra.mxu0 %v1537
          %1577 = vmatmul.bf16.gmra.mxu0 %v1441
          %v1578 = vpop.f32.mrf.mxu0
          %v1579 = vadd.f32 %v1391, %v1578
          %v1580 = vpop.f32.mrf.mxu0
          %v1581 = vadd.f32 %v1391, %v1580
          %1582 = vmatmul.bf16.gmra.mxu0 %v1443
          %v1583 = vpop.f32.mrf.mxu0
          %v1584 = vadd.f32 %v1391, %v1583
          %v1585 = vpop.f32.mrf.mxu0
          %v1586 = vadd.f32 %v1391, %v1585
          %1587 = vmatmul.bf16.gmra.mxu0 %v1445
          %v1588 = vpop.f32.mrf.mxu0
          %v1589 = vadd.f32 %v1391, %v1588
          %v1590 = vpop.f32.mrf.mxu0
          %v1591 = vadd.f32 %v1391, %v1590
          %1592 = vmatmul.bf16.gmra.mxu0 %v1447
          %v1593 = vpop.f32.mrf.mxu0
          %v1594 = vadd.f32 %v1391, %v1593
          %v1595 = vpop.f32.mrf.mxu0
          %v1596 = vadd.f32 %v1391, %v1595
          %1597 = vmatmul.bf16.gmra.mxu0 %v1449
          %v1598 = vpop.f32.mrf.mxu0
          %v1599 = vadd.f32 %v1391, %v1598
          %v1600 = vpop.f32.mrf.mxu0
          %v1601 = vadd.f32 %v1391, %v1600
          %1602 = vmatmul.bf16.gmra.mxu0 %v1451
          %v1603 = vpop.f32.mrf.mxu0
          %v1604 = vadd.f32 %v1391, %v1603
          %v1605 = vpop.f32.mrf.mxu0
          %v1606 = vadd.f32 %v1391, %v1605
          %1607 = vmatmul.bf16.gmra.mxu0 %v1453
          %v1608 = vpop.f32.mrf.mxu0
          %v1609 = vadd.f32 %v1391, %v1608
          %v1610 = vpop.f32.mrf.mxu0
          %v1611 = vadd.f32 %v1391, %v1610
          %1612 = vmatmul.bf16.gmra.mxu0 %v1455
          %v1613 = vpop.f32.mrf.mxu0
          %v1614 = vadd.f32 %v1391, %v1613
          %v1615 = vpop.f32.mrf.mxu0
          %v1616 = vadd.f32 %v1391, %v1615
          %1617 = vdwg.mxu0
          %1618 = vmatpush.bf16.msra.mxu0 %v1552
          %1619 = vmatpush.bf16.msra.mxu0 %v1551
          %1620 = vmatpush.bf16.msra.mxu0 %v1550
          %1621 = vmatpush.bf16.msra.mxu0 %v1549
          %1622 = vmatpush.bf16.msra.mxu0 %v1548
          %1623 = vmatpush.bf16.msra.mxu0 %v1547
          %1624 = vmatpush.bf16.msra.mxu0 %v1546
          %1625 = vmatpush.bf16.msra.mxu0 %v1545
          %1626 = vmatmul.bf16.gmra.mxu0 %v1442
          %v1627 = vpop.f32.mrf.mxu0
          %v1628 = vadd.f32 %v1579, %v1627
          %v1629 = vpop.f32.mrf.mxu0
          %v1630 = vadd.f32 %v1581, %v1629
          %1631 = vmatmul.bf16.gmra.mxu0 %v1444
          %v1632 = vpop.f32.mrf.mxu0
          %v1633 = vadd.f32 %v1584, %v1632
          %v1634 = vpop.f32.mrf.mxu0
          %v1635 = vadd.f32 %v1586, %v1634
          %1636 = vmatmul.bf16.gmra.mxu0 %v1446
          %v1637 = vpop.f32.mrf.mxu0
          %v1638 = vadd.f32 %v1589, %v1637
          %v1639 = vpop.f32.mrf.mxu0
          %v1640 = vadd.f32 %v1591, %v1639
          %1641 = vmatmul.bf16.gmra.mxu0 %v1448
          %v1642 = vpop.f32.mrf.mxu0
          %v1643 = vadd.f32 %v1594, %v1642
          %v1644 = vpop.f32.mrf.mxu0
          %v1645 = vadd.f32 %v1596, %v1644
          %1646 = vmatmul.bf16.gmra.mxu0 %v1450
          %v1647 = vpop.f32.mrf.mxu0
          %v1648 = vadd.f32 %v1599, %v1647
          %v1649 = vpop.f32.mrf.mxu0
          %v1650 = vadd.f32 %v1601, %v1649
          %1651 = vmatmul.bf16.gmra.mxu0 %v1452
          %v1652 = vpop.f32.mrf.mxu0
          %v1653 = vadd.f32 %v1604, %v1652
          %v1654 = vpop.f32.mrf.mxu0
          %v1655 = vadd.f32 %v1606, %v1654
          %1656 = vmatmul.bf16.gmra.mxu0 %v1454
          %v1657 = vpop.f32.mrf.mxu0
          %v1658 = vadd.f32 %v1609, %v1657
          %v1659 = vpop.f32.mrf.mxu0
          %v1660 = vadd.f32 %v1611, %v1659
          %1661 = vmatmul.bf16.gmra.mxu0 %v1456
          %v1662 = vpop.f32.mrf.mxu0
          %v1663 = vadd.f32 %v1614, %v1662
          %v1664 = vpop.f32.mrf.mxu0
          %v1665 = vadd.f32 %v1616, %v1664
          %1666 = vdwg.mxu0
          %v1667 = vmax.f32 %v1628, 0.0
          %v1668 = vmax.f32 %v1630, 0.0
          %v1669 = vmax.f32 %v1633, 0.0
          %v1670 = vmax.f32 %v1635, 0.0
          %v1671 = vmax.f32 %v1638, 0.0
          %v1672 = vmax.f32 %v1640, 0.0
          %v1673 = vmax.f32 %v1643, 0.0
          %v1674 = vmax.f32 %v1645, 0.0
          %v1675 = vmax.f32 %v1648, 0.0
          %v1676 = vmax.f32 %v1650, 0.0
          %v1677 = vmax.f32 %v1653, 0.0
          %v1678 = vmax.f32 %v1655, 0.0
          %v1679 = vmax.f32 %v1658, 0.0
          %v1680 = vmax.f32 %v1660, 0.0
          %v1681 = vmax.f32 %v1663, 0.0
          %v1682 = vmax.f32 %v1665, 0.0
          %s1683 = scalar_lea.vmem [#allocation5], %s410
          %vm1684 = vcmask 523264
          %1685 = vst.msk [vmem:[%s1683] sm:$0xff] %vm1684, %v1667
          %1686 = vst.msk [vmem:[%s1683 + $0x8] sm:$0xff] %vm1684, %v1668
          %1687 = vst.msk [vmem:[%s1683 + $0x10] sm:$0xff] %vm1684, %v1669
          %1688 = vst.msk [vmem:[%s1683 + $0x18] sm:$0xff] %vm1684, %v1670
          %1689 = vst.msk [vmem:[%s1683 + $0x20] sm:$0xff] %vm1684, %v1671
          %1690 = vst.msk [vmem:[%s1683 + $0x28] sm:$0xff] %vm1684, %v1672
          %1691 = vst.msk [vmem:[%s1683 + $0x30] sm:$0xff] %vm1684, %v1673
          %1692 = vst.msk [vmem:[%s1683 + $0x38] sm:$0xff] %vm1684, %v1674
          %1693 = vst.msk [vmem:[%s1683 + $0x40] sm:$0xff] %vm1684, %v1675
          %1694 = vst.msk [vmem:[%s1683 + $0x48] sm:$0xff] %vm1684, %v1676
          %1695 = vst.msk [vmem:[%s1683 + $0x50] sm:$0xff] %vm1684, %v1677
          %1696 = vst.msk [vmem:[%s1683 + $0x58] sm:$0xff] %vm1684, %v1678
          %1697 = vst.msk [vmem:[%s1683 + $0x60] sm:$0xff] %vm1684, %v1679
          %1698 = vst.msk [vmem:[%s1683 + $0x68] sm:$0xff] %vm1684, %v1680
          %1699 = vst.msk [vmem:[%s1683 + $0x70] sm:$0xff] %vm1684, %v1681
          %1700 = vst.msk [vmem:[%s1683 + $0x78] sm:$0xff] %vm1684, %v1682
          %v1701 = vld [vmem:[#allocation7] sm:$0x1]
          %v1702 = vsel %vm1684, %v1667, 0.0
          %v1703 = vsel %vm1684, %v1668, 0.0
          %v1704 = vadd.f32 %v1702, %v1703
          %v1705 = vsel %vm1684, %v1669, 0.0
          %v1706 = vadd.f32 %v1704, %v1705
          %v1707 = vsel %vm1684, %v1670, 0.0
          %v1708 = vadd.f32 %v1706, %v1707
          %v1709 = vsel %vm1684, %v1671, 0.0
          %v1710 = vadd.f32 %v1708, %v1709
          %v1711 = vsel %vm1684, %v1672, 0.0
          %v1712 = vadd.f32 %v1710, %v1711
          %v1713 = vsel %vm1684, %v1673, 0.0
          %v1714 = vadd.f32 %v1712, %v1713
          %v1715 = vsel %vm1684, %v1674, 0.0
          %v1716 = vadd.f32 %v1714, %v1715
          %v1717 = vsel %vm1684, %v1675, 0.0
          %v1718 = vadd.f32 %v1716, %v1717
          %v1719 = vsel %vm1684, %v1676, 0.0
          %v1720 = vadd.f32 %v1718, %v1719
          %v1721 = vsel %vm1684, %v1677, 0.0
          %v1722 = vadd.f32 %v1720, %v1721
          %v1723 = vsel %vm1684, %v1678, 0.0
          %v1724 = vadd.f32 %v1722, %v1723
          %v1725 = vsel %vm1684, %v1679, 0.0
          %v1726 = vadd.f32 %v1724, %v1725
          %v1727 = vsel %vm1684, %v1680, 0.0
          %v1728 = vadd.f32 %v1726, %v1727
          %v1729 = vsel %vm1684, %v1681, 0.0
          %v1730 = vadd.f32 %v1728, %v1729
          %v1731 = vsel %vm1684, %v1682, 0.0
          %v1732 = vadd.f32 %v1730, %v1731
          %v1733 = vrot.slane %v1732, 4
          %v1734 = vadd.f32 %v1732, %v1733
          %v1735 = vrot.slane %v1734, 2
          %v1736 = vadd.f32 %v1734, %v1735
          %v1737 = vrot.slane %v1736, 1
          %v1738 = vadd.f32 %v1736, %v1737
          %v1739 = vadd.f32 %v1701, %v1738
          %vm1740 = vcmask 516096
          %1741 = vst.msk [vmem:[#allocation7] sm:$0x1] %vm1740, %v1739
          %v1742 = vld [vmem:[#allocation7 + $0x1] sm:$0x1]
          %v1743 = vmul.f32 %v1667, %v1667
          %v1744 = vmul.f32 %v1668, %v1668
          %v1745 = vmul.f32 %v1669, %v1669
          %v1746 = vmul.f32 %v1670, %v1670
          %v1747 = vmul.f32 %v1671, %v1671
          %v1748 = vmul.f32 %v1672, %v1672
          %v1749 = vmul.f32 %v1673, %v1673
          %v1750 = vmul.f32 %v1674, %v1674
          %v1751 = vmul.f32 %v1675, %v1675
          %v1752 = vmul.f32 %v1676, %v1676
          %v1753 = vmul.f32 %v1677, %v1677
          %v1754 = vmul.f32 %v1678, %v1678
          %v1755 = vmul.f32 %v1679, %v1679
          %v1756 = vmul.f32 %v1680, %v1680
          %v1757 = vmul.f32 %v1681, %v1681
          %v1758 = vmul.f32 %v1682, %v1682
          %v1759 = vsel %vm1684, %v1743, 0.0
          %v1760 = vsel %vm1684, %v1744, 0.0
          %v1761 = vadd.f32 %v1759, %v1760
          %v1762 = vsel %vm1684, %v1745, 0.0
          %v1763 = vadd.f32 %v1761, %v1762
          %v1764 = vsel %vm1684, %v1746, 0.0
          %v1765 = vadd.f32 %v1763, %v1764
          %v1766 = vsel %vm1684, %v1747, 0.0
          %v1767 = vadd.f32 %v1765, %v1766
          %v1768 = vsel %vm1684, %v1748, 0.0
          %v1769 = vadd.f32 %v1767, %v1768
          %v1770 = vsel %vm1684, %v1749, 0.0
          %v1771 = vadd.f32 %v1769, %v1770
          %v1772 = vsel %vm1684, %v1750, 0.0
          %v1773 = vadd.f32 %v1771, %v1772
          %v1774 = vsel %vm1684, %v1751, 0.0
          %v1775 = vadd.f32 %v1773, %v1774
          %v1776 = vsel %vm1684, %v1752, 0.0
          %v1777 = vadd.f32 %v1775, %v1776
          %v1778 = vsel %vm1684, %v1753, 0.0
          %v1779 = vadd.f32 %v1777, %v1778
          %v1780 = vsel %vm1684, %v1754, 0.0
          %v1781 = vadd.f32 %v1779, %v1780
          %v1782 = vsel %vm1684, %v1755, 0.0
          %v1783 = vadd.f32 %v1781, %v1782
          %v1784 = vsel %vm1684, %v1756, 0.0
          %v1785 = vadd.f32 %v1783, %v1784
          %v1786 = vsel %vm1684, %v1757, 0.0
          %v1787 = vadd.f32 %v1785, %v1786
          %v1788 = vsel %vm1684, %v1758, 0.0
          %v1789 = vadd.f32 %v1787, %v1788
          %v1790 = vrot.slane %v1789, 4
          %v1791 = vadd.f32 %v1789, %v1790
          %v1792 = vrot.slane %v1791, 2
          %v1793 = vadd.f32 %v1791, %v1792
          %v1794 = vrot.slane %v1793, 1
          %v1795 = vadd.f32 %v1793, %v1794
          %v1796 = vadd.f32 %v1742, %v1795
          %1797 = vst.msk [vmem:[#allocation7 + $0x1] sm:$0x1] %vm1740, %v1796
        $region76: #{tpu_custom_call.1} parent=51 // pred_fallthru
          _
        %p1798 = scmp.eq.s32.totalorder %s27, 4
        // Predicated region
        $region77: #{tpu_custom_call.1} parent=51 // pred_check
          %p1799 = pneg %p1798
        $region78: #{tpu_custom_call.1} parent=51 // pred_check_branch
          %1801 = sbr.rel (%p1799) target = $region80
        $region79: #{tpu_custom_call.1} parent=51 // pred_region
          %v1802 = vld [vmem:[#allocation7] sm:$0x1]
          %v1803 = vmul.f32 %v1802, 0.00390625
          %v1804 = vld [vmem:[#allocation7 + $0x1] sm:$0x1]
          %v1805 = vmul.f32 %v1804, 0.00390625
          %v1806 = vmul.f32 %v1803, %v1803
          %v1807 = vsub.f32 %v1805, %v1806
          %v1808 = vmax.f32 %v1807, 0.0
          %s1809 = scalar_lea.vmem [#allocation5], %s410
          %v1810 = vld [vmem:[%s1809] sm:$0xff]
          %v1811 = vld [vmem:[%s1809 + $0x8] sm:$0xff]
          %v1812 = vld [vmem:[%s1809 + $0x10] sm:$0xff]
          %v1813 = vld [vmem:[%s1809 + $0x18] sm:$0xff]
          %v1814 = vld [vmem:[%s1809 + $0x20] sm:$0xff]
          %v1815 = vld [vmem:[%s1809 + $0x28] sm:$0xff]
          %v1816 = vld [vmem:[%s1809 + $0x30] sm:$0xff]
          %v1817 = vld [vmem:[%s1809 + $0x38] sm:$0xff]
          %v1818 = vld [vmem:[%s1809 + $0x40] sm:$0xff]
          %v1819 = vld [vmem:[%s1809 + $0x48] sm:$0xff]
          %v1820 = vld [vmem:[%s1809 + $0x50] sm:$0xff]
          %v1821 = vld [vmem:[%s1809 + $0x58] sm:$0xff]
          %v1822 = vld [vmem:[%s1809 + $0x60] sm:$0xff]
          %v1823 = vld [vmem:[%s1809 + $0x68] sm:$0xff]
          %v1824 = vld [vmem:[%s1809 + $0x70] sm:$0xff]
          %v1825 = vld [vmem:[%s1809 + $0x78] sm:$0xff]
          %v1826 = vperm.slane %v1803, 0
          %v1827 = vsub.f32 %v1810, %v1826
          %v1828 = vsub.f32 %v1811, %v1826
          %v1829 = vsub.f32 %v1812, %v1826
          %v1830 = vsub.f32 %v1813, %v1826
          %v1831 = vsub.f32 %v1814, %v1826
          %v1832 = vsub.f32 %v1815, %v1826
          %v1833 = vsub.f32 %v1816, %v1826
          %v1834 = vsub.f32 %v1817, %v1826
          %v1835 = vsub.f32 %v1818, %v1826
          %v1836 = vsub.f32 %v1819, %v1826
          %v1837 = vsub.f32 %v1820, %v1826
          %v1838 = vsub.f32 %v1821, %v1826
          %v1839 = vsub.f32 %v1822, %v1826
          %v1840 = vsub.f32 %v1823, %v1826
          %v1841 = vsub.f32 %v1824, %v1826
          %v1842 = vsub.f32 %v1825, %v1826
          %v1843 = vadd.f32 %v1808, 1e-06
          %v1844 = vrsqrt.pop %v1843
          %v1845 = vmul.f32 %v1844, %v1843
          %v1846 = vmul.f32 %v1845, %v1844
          %v1847 = vmul.f32 0.5, %v1846
          %v1848 = vsub.f32 1.5, %v1847
          %v1849 = vmul.f32 %v1844, %v1848
          %vm1850 = vweird.f32 %v1843
          %vm1851 = vweird.f32 %v1844
          %vm1852 = vmor %vm1850, %vm1851
          %v1853 = vsel %vm1852, %v1844, %v1849
          %v1854 = vperm.slane %v1853, 0
          %v1855 = vmul.f32 %v1827, %v1854
          %v1856 = vmul.f32 %v1828, %v1854
          %v1857 = vmul.f32 %v1829, %v1854
          %v1858 = vmul.f32 %v1830, %v1854
          %v1859 = vmul.f32 %v1831, %v1854
          %v1860 = vmul.f32 %v1832, %v1854
          %v1861 = vmul.f32 %v1833, %v1854
          %v1862 = vmul.f32 %v1834, %v1854
          %v1863 = vmul.f32 %v1835, %v1854
          %v1864 = vmul.f32 %v1836, %v1854
          %v1865 = vmul.f32 %v1837, %v1854
          %v1866 = vmul.f32 %v1838, %v1854
          %v1867 = vmul.f32 %v1839, %v1854
          %v1868 = vmul.f32 %v1840, %v1854
          %v1869 = vmul.f32 %v1841, %v1854
          %v1870 = vmul.f32 %v1842, %v1854
          %v1871 = vpack.c.bf16 %v1856, %v1855
          %v1872 = vpack.c.bf16 %v1858, %v1857
          %v1873 = vpack.c.bf16 %v1860, %v1859
          %v1874 = vpack.c.bf16 %v1862, %v1861
          %v1875 = vpack.c.bf16 %v1864, %v1863
          %v1876 = vpack.c.bf16 %v1866, %v1865
          %v1877 = vpack.c.bf16 %v1868, %v1867
          %v1878 = vpack.c.bf16 %v1870, %v1869
          %v1879 = vld [vmem:[#allocation9] sm:$0xf]
          %v1880 = vld [vmem:[#allocation9 + $0x4] sm:$0xf]
          %v1881 = vld [vmem:[#allocation9 + $0x8] sm:$0xf]
          %v1882 = vld [vmem:[#allocation9 + $0xc] sm:$0xf]
          %v1883 = vld [vmem:[#allocation9 + $0x10] sm:$0xf]
          %v1884 = vld [vmem:[#allocation9 + $0x14] sm:$0xf]
          %v1885 = vld [vmem:[#allocation9 + $0x18] sm:$0xf]
          %v1886 = vld [vmem:[#allocation9 + $0x1c] sm:$0xf]
          %v1887 = vld [vmem:[%s7] sm:$0x1]
          %v1889 = vperm.slane %v1887, 0
          %v1899 = vunpack.c.l.b16 %v1879
          %v1900 = vunpack.c.l.b16 %v1880
          %v1901 = vunpack.c.l.b16 %v1881
          %v1902 = vunpack.c.l.b16 %v1882
          %v1903 = vunpack.c.l.b16 %v1883
          %v1904 = vunpack.c.l.b16 %v1884
          %v1905 = vunpack.c.l.b16 %v1885
          %v1906 = vunpack.c.l.b16 %v1886
          %v1907 = vpack.c.b16 %v1900, %v1899
          %v1908 = vpack.c.b16 %v1902, %v1901
          %v1909 = vpack.c.b16 %v1904, %v1903
          %v1910 = vpack.c.b16 %v1906, %v1905
          %vm1915 = vcmask 523264
          %v1917 = vsel %vm1915, %v1871, 0
          %v1920 = vsel %vm1915, %v1872, 0
          %v1923 = vsel %vm1915, %v1873, 0
          %v1926 = vsel %vm1915, %v1874, 0
          %v1929 = vsel %vm1915, %v1875, 0
          %v1932 = vsel %vm1915, %v1876, 0
          %v1935 = vsel %vm1915, %v1877, 0
          %v1938 = vsel %vm1915, %v1878, 0
          %1940 = vmatpush.bf16.msra.mxu0 0
          %1941 = vmatpush.bf16.msra.mxu0 0
          %1942 = vmatpush.bf16.msra.mxu0 0
          %1943 = vmatpush.bf16.msra.mxu0 0
          %1944 = vmatpush.bf16.msra.mxu0 %v1910
          %1945 = vmatpush.bf16.msra.mxu0 %v1909
          %1946 = vmatpush.bf16.msra.mxu0 %v1908
          %1947 = vmatpush.bf16.msra.mxu0 %v1907
          %1948 = vmatmul.bf16.gmra.mxu0 %v1917
          %v1949 = vpop.f32.mrf.mxu0
          %v1950 = vadd.f32 %v1889, %v1949
          %v1951 = vpop.f32.mrf.mxu0
          %v1952 = vadd.f32 %v1889, %v1951
          %1953 = vmatmul.bf16.gmra.mxu0 %v1920
          %v1954 = vpop.f32.mrf.mxu0
          %v1955 = vadd.f32 %v1889, %v1954
          %v1956 = vpop.f32.mrf.mxu0
          %v1957 = vadd.f32 %v1889, %v1956
          %1958 = vmatmul.bf16.gmra.mxu0 %v1923
          %v1959 = vpop.f32.mrf.mxu0
          %v1960 = vadd.f32 %v1889, %v1959
          %v1961 = vpop.f32.mrf.mxu0
          %v1962 = vadd.f32 %v1889, %v1961
          %1963 = vmatmul.bf16.gmra.mxu0 %v1926
          %v1964 = vpop.f32.mrf.mxu0
          %v1965 = vadd.f32 %v1889, %v1964
          %v1966 = vpop.f32.mrf.mxu0
          %v1967 = vadd.f32 %v1889, %v1966
          %1968 = vmatmul.bf16.gmra.mxu0 %v1929
          %v1969 = vpop.f32.mrf.mxu0
          %v1970 = vadd.f32 %v1889, %v1969
          %v1971 = vpop.f32.mrf.mxu0
          %v1972 = vadd.f32 %v1889, %v1971
          %1973 = vmatmul.bf16.gmra.mxu0 %v1932
          %v1974 = vpop.f32.mrf.mxu0
          %v1975 = vadd.f32 %v1889, %v1974
          %v1976 = vpop.f32.mrf.mxu0
          %v1977 = vadd.f32 %v1889, %v1976
          %1978 = vmatmul.bf16.gmra.mxu0 %v1935
          %v1979 = vpop.f32.mrf.mxu0
          %v1980 = vadd.f32 %v1889, %v1979
          %v1981 = vpop.f32.mrf.mxu0
          %v1982 = vadd.f32 %v1889, %v1981
          %1983 = vmatmul.bf16.gmra.mxu0 %v1938
          %v1984 = vpop.f32.mrf.mxu0
          %v1985 = vadd.f32 %v1889, %v1984
          %v1986 = vpop.f32.mrf.mxu0
          %v1987 = vadd.f32 %v1889, %v1986
          %1988 = vdwg.mxu0
          %1989 = vst [vmem:[%s380] sm:$0xff] %v1950
          %1990 = vst [vmem:[%s380 + $0x8] sm:$0xff] %v1952
          %1991 = vst [vmem:[%s380 + $0x10] sm:$0xff] %v1955
          %1992 = vst [vmem:[%s380 + $0x18] sm:$0xff] %v1957
          %1993 = vst [vmem:[%s380 + $0x20] sm:$0xff] %v1960
          %1994 = vst [vmem:[%s380 + $0x28] sm:$0xff] %v1962
          %1995 = vst [vmem:[%s380 + $0x30] sm:$0xff] %v1965
          %1996 = vst [vmem:[%s380 + $0x38] sm:$0xff] %v1967
          %1997 = vst [vmem:[%s380 + $0x40] sm:$0xff] %v1970
          %1998 = vst [vmem:[%s380 + $0x48] sm:$0xff] %v1972
          %1999 = vst [vmem:[%s380 + $0x50] sm:$0xff] %v1975
          %2000 = vst [vmem:[%s380 + $0x58] sm:$0xff] %v1977
          %2001 = vst [vmem:[%s380 + $0x60] sm:$0xff] %v1980
          %2002 = vst [vmem:[%s380 + $0x68] sm:$0xff] %v1982
          %2003 = vst [vmem:[%s380 + $0x70] sm:$0xff] %v1985
          %2004 = vst [vmem:[%s380 + $0x78] sm:$0xff] %v1987
        $region80: #{tpu_custom_call.1} parent=51 // pred_fallthru
          _
        %s2005 = sand.u32 %s237, 1
        %s2006 = scalar_lea.sflag [#allocation11], %s2005
        %s2007 = sand.u32 %s237, 1
        %s2008 = smul.addr %s2007, 128
        %s2009 = scalar_lea.vmem [#allocation12], %s2008
        // Predicated region
        $region81: #{tpu_custom_call.1} parent=51 // pred_check
          %p2010 = pneg %p247
        $region82: #{tpu_custom_call.1} parent=51 // pred_check_branch
          %2012 = sbr.rel (%p2010) target = $region84
        $region83: #{tpu_custom_call.1} parent=51 // pred_region
          %p2013 = scmp.eq.s32.totalorder %s27, 4
          %s2014 = scalar_select %p2013, %s28, 0
          %s2015 = smul.u32 16, %s2014
          %2017 = vsyncadd %s2006, 0
          %s2018 = smul.addr %s2015, 8
          %s2019 = scalar_lea.hbm %s8, %s2018
          %s2020 = sshll.u32 %s2009, 4
          %s2021 = int_to_ptr.vmem [resolvable:$true] %s2020
          %s2022 = sshll.u32 %s2019, 4
          %s2023 = int_to_ptr.hbm [resolvable:$true] %s2022
          %2028 = dma.vmem_to_hbm [thread:$0]  %s2021, 2048, %s2023, %s2006, 128, 128, 8
        $region84: #{tpu_custom_call.1} parent=51 // pred_fallthru
          _
      $region52: #{tpu_custom_call.1} parent=5 // pred_fallthru
        _
      %p2029 = scmp.le.s32.totalorder 2, %s18
      // Predicated region
      $region85: #{tpu_custom_call.1} parent=5 // pred_check
        %p2030 = pneg %p2029
      $region86: #{tpu_custom_call.1} parent=5 // pred_check_branch
        %2032 = sbr.rel (%p2030) target = $region88
      $region87: #{tpu_custom_call.1} parent=5 // pred_region
        %s2033 = ssub.s32 %s18, 2
        // Predicated region
        $region89: #{tpu_custom_call.1} parent=87 // pred_check
          %p2034 = pneg %p253
        $region90: #{tpu_custom_call.1} parent=87 // pred_check_branch
          %2036 = sbr.rel (%p2034) target = $region92
        $region91: #{tpu_custom_call.1} parent=87 // pred_region
          %s2037 = sand.u32 %s238, 1
          %s2038 = scalar_lea.sflag [#allocation11], %s2037
          %s2039 = sand.u32 %s238, 1
          %s2040 = smul.addr %s2039, 128
          %s2041 = scalar_lea.vmem [#allocation12], %s2040
          %2043 = dma.done %s2038, 2048
        $region92: #{tpu_custom_call.1} parent=87 // pred_fallthru
          _
      $region88: #{tpu_custom_call.1} parent=5 // pred_fallthru
        _
    $region6: #{tpu_custom_call.1} parent=1 // loop_footer
      %s22 = sadd.s32 1, %s18
    $region7: #{tpu_custom_call.1} parent=1 // loop_footer_branch
      %17 = sbr.rel target = $region3
    $region8: #{tpu_custom_call.1} parent=1 // loop_exit
      _
    %2044 = vsyncpa [#allocation10], 1
    %s2045 = scalar_lea.sflag [#allocation10], 1
    %2046 = vsyncpa %s2045, 1
    %2047 = vsyncpa [#allocation11], 1
    %s2048 = scalar_lea.sflag [#allocation11], 1
    %2049 = vsyncpa %s2048, 1

</llo_original>
